<compile_context>
chip_gen: v6e
topology: v6e:2x2x1
jax: 0.10.0
libtpu: 0.0.40
codegen_flags: <defaults>
</compile_context>

<pallas_src>
import functools
import math

import jax
import jax.numpy as jnp
from jax.experimental import pallas as pl
from jax.experimental.pallas import tpu as pltpu

_LANE = 128


def _sdpa_kernel(q_ref, k_ref, v_ref, o_ref, *, scale):
    # Blocks are (T, L2, Dk) in VMEM: T independent attention problems.
    q = q_ref[...]
    k = k_ref[...]
    v = v_ref[...]

    # scores: (T, L2, L2) f32.  Contraction over the last axis of BOTH operands
    # -> the MXU consumes K directly; no k.T is materialized.
    s = jnp.einsum("bqd,bkd->bqk", q, k, preferred_element_type=jnp.float32)
    s = s * scale  # exact f32 scale; avoids bf16 VALU converts on v5e

    # Numerically stable softmax over the last axis (f32).
    m = jnp.max(s, axis=-1, keepdims=True)
    e = jnp.exp(s - m)
    denom = jnp.sum(e, axis=-1, keepdims=True)
    attn = e * pl.reciprocal(denom, approx=True)  # EUP slot, ~free next to exp

    # context: (T, L2, Dk); feed attn to the MXU in V's dtype, accumulate f32.
    ctx = jnp.einsum("bqk,bkd->bqd", attn.astype(v.dtype), v,
                     preferred_element_type=jnp.float32)
    o_ref[...] = ctx.astype(o_ref.dtype)
    # TODO(synk): for L2 beyond ~1-2K, switch to a kv-block inner loop with
    # online softmax instead of materializing the full (T, L2, L2) f32 scores.


def _round_up(x, m):
    return ((x + m - 1) // m) * m


def _sublane(itemsize):
    # Sublane tile: 8 rows for 4-byte, 16 for 2-byte, 32 for 1-byte dtypes.
    return max(8, 32 // max(int(itemsize), 1))


def _vmem_budget_and_limit():
    """(tile-selection budget, vmem_limit_bytes) scaled to the TPU generation."""
    cap = None
    try:
        info = pltpu.get_tpu_info()
        for name in ("vmem_capacity_bytes", "vmem_size_bytes", "vmem_bytes"):
            val = getattr(info, name, None)
            if val:
                cap = int(val)
                break
    except Exception:
        cap = None
    if cap is None:
        cap = 64 * 1024 * 1024  # conservative fallback: v7x per-TC VMEM
    budget = (cap * 3) // 4      # ~96 MiB on v5e/v6e (128 MiB), ~48 MiB on v7x
    limit = (cap * 7) // 8       # slack above the model, still below physical
    return budget, limit


def _choose_batch_tile(n, l2, dk, itemsize, budget):
    """Number of independent (l2, dk) problems processed per grid step."""
    if n <= 1:
        return 1

    lane_dk = _round_up(dk, _LANE)
    lane_l2 = _round_up(l2, _LANE)
    sub_l2_io = _round_up(l2, _sublane(itemsize))  # io blocks, native dtype
    sub_l2_f32 = _round_up(l2, 8)                  # f32 intermediates

    def vmem_bytes(t):
        # q, k, v, o blocks: double-buffered, padded to (sublane, 128-lane).
        io = 4 * 2 * t * sub_l2_io * lane_dk * itemsize
        # f32 intermediates: scores + exp/attn (same shape) + f32 context.
        interm = (2 * t * sub_l2_f32 * lane_l2 * 4
                  + t * sub_l2_f32 * lane_dk * 4)
        return io + interm

    def hbm_bytes(t):
        # Actual HBM traffic per step (un-padded): 3 inputs + 1 output.
        return 4 * t * l2 * dk * itemsize

    # Memory-bound: target a few MiB of HBM traffic per grid step so the
    # ~0.35us/step pipeline overhead is amortized (>=85% of roofline at ~1 MiB+).
    target = 4 * 1024 * 1024
    t = max(1, min(n, -(-target // max(hbm_bytes(1), 1))))
    while t > 1 and vmem_bytes(t) > budget:
        t = max(1, t // 2)

    # Prefer the largest divisor of n not exceeding t: no HBM-side pad copy.
    d = t
    while d > 1 and n % d:
        d -= 1
    if d * 2 >= t:
        return int(d)
    return int(t)


def scaled_dot_product_attention(Q, K, V):
    """Q, K, V: [B, n_heads, len1, len2, d_k] -> context of the same shape."""
    B, H, L1, L2, Dk = Q.shape
    assert K.shape == Q.shape and V.shape == Q.shape

    N = B * H * L1
    budget, vmem_limit = _vmem_budget_and_limit()
    T = _choose_batch_tile(N, L2, Dk, Q.dtype.itemsize, budget)
    n_steps = (N + T - 1) // T
    n_pad = n_steps * T

    qf = Q.reshape(N, L2, Dk)
    kf = K.reshape(N, L2, Dk)
    vf = V.reshape(N, L2, Dk)
    if n_pad != N:
        # Fallback only (T is normally a divisor of N).  Zero rows -> uniform
        # softmax, no NaNs; the extra rows are sliced off below.
        pad = ((0, n_pad - N), (0, 0), (0, 0))
        qf, kf, vf = (jnp.pad(a, pad) for a in (qf, kf, vf))

    spec = pl.BlockSpec((T, L2, Dk), lambda i: (i, 0, 0))
    # TODO(synk): with Dk < 128 the VMEM tiles are lane-padded and stores are
    # lane-masked; a lane-dense (N, L2*Dk) layout would need an in-kernel
    # minor-dim reshape that Mosaic does not reliably lower for these shapes.

    out = pl.pallas_call(
        functools.partial(_sdpa_kernel, scale=1.0 / math.sqrt(Dk)),
        out_shape=jax.ShapeDtypeStruct((n_pad, L2, Dk), Q.dtype),
        grid_spec=pltpu.PrefetchScalarGridSpec(
            num_scalar_prefetch=0,
            grid=(n_steps,),
            in_specs=[spec, spec, spec],
            out_specs=spec,
        ),
        compiler_params=pltpu.CompilerParams(
            dimension_semantics=("parallel",),   # shards steps across v7x TCs
            vmem_limit_bytes=int(vmem_limit),
        ),
    )(qf, kf, vf)

    if n_pad != N:
        out = out[:N]
    return out.reshape(B, H, L1, L2, Dk)


def _reference(Q, K, V):
    d_k = Q.shape[-1]
    scores = jnp.einsum("bhlqd,bhlkd->bhlqk", Q, K) / jnp.sqrt(
        jnp.array(d_k, jnp.float32)
    )
    attn = jax.nn.softmax(scores, axis=-1)
    return jnp.einsum("bhlqk,bhlkd->bhlqd", attn, V)


if __name__ == "__main__":
    # Small shapes consistent with the module: [batch, n_heads, len1, len2, d_k]
    B, H, L1, L2, Dk = 2, 2, 4, 8, 32

    key = jax.random.PRNGKey(0)
    kq, kk, kv = jax.random.split(key, 3)
    Q = jax.random.normal(kq, (B, H, L1, L2, Dk), dtype=jnp.float32)
    K = jax.random.normal(kk, (B, H, L1, L2, Dk), dtype=jnp.float32)
    V = jax.random.normal(kv, (B, H, L1, L2, Dk), dtype=jnp.float32)

    out = jax.block_until_ready(scaled_dot_product_attention(Q, K, V))
    ref = _reference(Q, K, V)

    assert out.shape == (B, H, L1, L2, Dk)
    # Tolerance covers the EUP approximate reciprocal used in the softmax.
    assert jnp.allclose(out, ref, atol=2e-3, rtol=2e-3), "mismatch vs reference"

    print("KERNEL_OK")
</pallas_src>

<mosaic_0001>
module attributes {stable_mosaic.version = 11 : i64} {
  func.func @_sdpa_kernel(%arg0: i32, %arg1: memref<16x8x32xf32, #tpu.memory_space<vmem>>, %arg2: memref<16x8x32xf32, #tpu.memory_space<vmem>>, %arg3: memref<16x8x32xf32, #tpu.memory_space<vmem>>, %arg4: memref<16x8x32xf32, #tpu.memory_space<vmem>>) attributes {dimension_semantics = [#tpu.dimension_semantics<parallel>], iteration_bounds = array<i64: 1>, scalar_prefetch = 0 : i64, scratch_operands = 0 : i64, tpu.core_type = #tpu.core_type<tc>, window_params = [{transform_indices = @transform_0, window_bounds = array<i64: 16, 8, 32>}, {transform_indices = @transform_1, window_bounds = array<i64: 16, 8, 32>}, {transform_indices = @transform_2, window_bounds = array<i64: 16, 8, 32>}, {transform_indices = @transform_3, window_bounds = array<i64: 16, 8, 32>}]} {
    %c0 = arith.constant 0 : index
    %c0_0 = arith.constant 0 : index
    %c0_1 = arith.constant 0 : index
    %0 = vector.load %arg1[%c0, %c0_0, %c0_1] : memref<16x8x32xf32, #tpu.memory_space<vmem>>, vector<16x8x32xf32>
    %c0_2 = arith.constant 0 : index
    %c0_3 = arith.constant 0 : index
    %c0_4 = arith.constant 0 : index
    %1 = vector.load %arg2[%c0_2, %c0_3, %c0_4] : memref<16x8x32xf32, #tpu.memory_space<vmem>>, vector<16x8x32xf32>
    %c0_5 = arith.constant 0 : index
    %c0_6 = arith.constant 0 : index
    %c0_7 = arith.constant 0 : index
    %2 = vector.load %arg3[%c0_5, %c0_6, %c0_7] : memref<16x8x32xf32, #tpu.memory_space<vmem>>, vector<16x8x32xf32>
    "tpu.trace_start"() <{level = 10 : i32, message = "bqd,bkd->bqk"}> : () -> ()
    %cst = arith.constant dense<0.000000e+00> : vector<16x8x8xf32>
    %3 = tpu.matmul %0, %1, %cst {dimension_numbers = #tpu.dot_dimension_numbers<[2], [2], [1], [1], [0, 0, 0, 1, 1, 1], [0], [0]>} : vector<16x8x32xf32>, vector<16x8x32xf32>, vector<16x8x8xf32> -> vector<16x8x8xf32>
    "tpu.trace_stop"() : () -> ()
    %cst_8 = arith.constant 0.176776692 : f32
    %4 = vector.broadcast %cst_8 : f32 to vector<16x8x8xf32>
    %5 = arith.mulf %3, %4 : vector<16x8x8xf32>
    %cst_9 = arith.constant dense<0xFF800000> : vector<16x8xf32>
    %6 = vector.multi_reduction <maximumf>, %5, %cst_9 [2] : vector<16x8x8xf32> to vector<16x8xf32>
    %7 = vector.shape_cast %6 : vector<16x8xf32> to vector<16x8x1xf32>
    %8 = vector.broadcast %7 : vector<16x8x1xf32> to vector<16x8x8xf32>
    %9 = arith.subf %5, %8 : vector<16x8x8xf32>
    %10 = math.exp %9 : vector<16x8x8xf32>
    %cst_10 = arith.constant dense<0.000000e+00> : vector<16x8xf32>
    %11 = vector.multi_reduction <add>, %10, %cst_10 [2] : vector<16x8x8xf32> to vector<16x8xf32>
    %12 = vector.shape_cast %11 : vector<16x8xf32> to vector<16x8x1xf32>
    %13 = tpu.reciprocal %12 {approx = true} : vector<16x8x1xf32> -> vector<16x8x1xf32>
    %14 = vector.broadcast %13 : vector<16x8x1xf32> to vector<16x8x8xf32>
    %15 = arith.mulf %10, %14 : vector<16x8x8xf32>
    "tpu.trace_start"() <{level = 10 : i32, message = "bqk,bkd->bqd"}> : () -> ()
    %cst_11 = arith.constant dense<0.000000e+00> : vector<16x8x32xf32>
    %16 = tpu.matmul %15, %2, %cst_11 {dimension_numbers = #tpu.dot_dimension_numbers<[2], [1], [1], [2], [0, 0, 0, 1, 1, 2], [0], [0]>} : vector<16x8x8xf32>, vector<16x8x32xf32>, vector<16x8x32xf32> -> vector<16x8x32xf32>
    "tpu.trace_stop"() : () -> ()
    %c0_12 = arith.constant 0 : index
    %c0_13 = arith.constant 0 : index
    %c0_14 = arith.constant 0 : index
    %17 = vector.load %arg4[%c0_12, %c0_13, %c0_14] : memref<16x8x32xf32, #tpu.memory_space<vmem>>, vector<16x8x32xf32>
    tpu.vector_store %arg4[%c0_12, %c0_13, %c0_14], %16 {strides = array<i32>} : memref<16x8x32xf32, #tpu.memory_space<vmem>>, vector<16x8x32xf32>,
    return
  }
  func.func @transform_0(%arg0: i32) -> (i32, i32, i32) {
    %c0_i32 = arith.constant 0 : i32
    %c0_i32_0 = arith.constant 0 : i32
    %c0_i32_1 = arith.constant 0 : i32
    return %arg0, %c0_i32, %c0_i32_0 : i32, i32, i32
  }
  func.func @transform_1(%arg0: i32) -> (i32, i32, i32) {
    %c0_i32 = arith.constant 0 : i32
    %c0_i32_0 = arith.constant 0 : i32
    %c0_i32_1 = arith.constant 0 : i32
    return %arg0, %c0_i32, %c0_i32_0 : i32, i32, i32
  }
  func.func @transform_2(%arg0: i32) -> (i32, i32, i32) {
    %c0_i32 = arith.constant 0 : i32
    %c0_i32_0 = arith.constant 0 : i32
    %c0_i32_1 = arith.constant 0 : i32
    return %arg0, %c0_i32, %c0_i32_0 : i32, i32, i32
  }
  func.func @transform_3(%arg0: i32) -> (i32, i32, i32) {
    %c0_i32 = arith.constant 0 : i32
    %c0_i32_0 = arith.constant 0 : i32
    %c0_i32_1 = arith.constant 0 : i32
    return %arg0, %c0_i32, %c0_i32_0 : i32, i32, i32
  }
}

</mosaic_0001>

<llo_original>
// kernel: tpu_custom_call.1
$region0: #{tpu_custom_call.1}
  #allocation0 [shape = 'u32[]', space=smem, size = 0x4, offset = 0x4, fixed_abs, tag = 'smem constant byte address 0x4 - core index']
  #allocation1 [shape = 'u32[144,128]{1,0:T(1,128)}', space=vmem, size = 0x12000, scoped, tag = 'internal scratch']
  %s0 = inlined_call_operand.hbm [shape: f32[16,8,32], index: 0, kind: input, shape index: {}]
  %s1 = inlined_call_operand.hbm [shape: f32[16,8,32], index: 1, kind: input, shape index: {}]
  %s2 = inlined_call_operand.hbm [shape: f32[16,8,32], index: 2, kind: input, shape index: {}]
  %s3 = inlined_call_operand.hbm [shape: f32[16,8,32], index: 3, kind: output, shape index: {}]
  %s4 = sld [smem:[#allocation0]]
  $region34: #{tpu_custom_call.1} parent=0
    _
  %s6 = ssub.s32 1, %s4
  %s7 = scalar_select 0, %s6, %s4
  $region1: #{tpu_custom_call.1} parent=0
    #allocation2 [shape = 'u8[65536]{0}', space=vmem, size = 0x10000, scoped, tag = 'input window, operand 0, single buffered']
    #allocation3 [shape = 's32[1]{0}', space=sflag, size = 0x4, scoped, tag = 'scoped memory for tpu_custom_call.1']
    #allocation4 [shape = 's32[1]{0}', space=sflag, size = 0x4, scoped, tag = 'scoped memory for tpu_custom_call.1']
    #allocation5 [shape = 'u8[65536]{0}', space=vmem, size = 0x10000, scoped, tag = 'input window, operand 1, single buffered']
    #allocation6 [shape = 's32[1]{0}', space=sflag, size = 0x4, scoped, tag = 'scoped memory for tpu_custom_call.1']
    #allocation7 [shape = 'u8[65536]{0}', space=vmem, size = 0x10000, scoped, tag = 'input window, operand 2, single buffered']
    #allocation8 [shape = 'u8[65536]{0}', space=vmem, size = 0x10000, scoped, tag = 'output window, operand 0, single buffered']
    %8 = vsyncpa [#allocation3], 0
    %9 = vsyncpa [#allocation6], 0
    %10 = vsyncpa [#allocation4], 0
    // Predicated region
    $region2: #{tpu_custom_call.1} parent=1 // pred_check
      _
    $region3: #{tpu_custom_call.1} parent=1 // pred_check_branch
      %12 = sbr.rel (0) target = $region5
    $region4: #{tpu_custom_call.1} parent=1 // pred_region
      %s14 = ssub.s32 2048, 2048
      %15 = vsyncadd [#allocation3], %s14
      %s16 = sshll.u32 [#allocation2], 4
      %s17 = int_to_ptr.vmem [resolvable:$true] %s16
      %22 = dma.hbm_to_vmem [thread:$0]  %s0, 2048, %s17, [#allocation3], 128, 128, 8
    $region5: #{tpu_custom_call.1} parent=1 // pred_fallthru
      _
    // Predicated region
    $region6: #{tpu_custom_call.1} parent=1 // pred_check
      _
    $region7: #{tpu_custom_call.1} parent=1 // pred_check_branch
      %24 = sbr.rel (0) target = $region9
    $region8: #{tpu_custom_call.1} parent=1 // pred_region
      %s26 = ssub.s32 2048, 2048
      %27 = vsyncadd [#allocation6], %s26
      %s28 = sshll.u32 [#allocation5], 4
      %s29 = int_to_ptr.vmem [resolvable:$true] %s28
      %34 = dma.hbm_to_vmem [thread:$0]  %s1, 2048, %s29, [#allocation6], 128, 128, 8
    $region9: #{tpu_custom_call.1} parent=1 // pred_fallthru
      _
    // Predicated region
    $region10: #{tpu_custom_call.1} parent=1 // pred_check
      _
    $region11: #{tpu_custom_call.1} parent=1 // pred_check_branch
      %36 = sbr.rel (0) target = $region13
    $region12: #{tpu_custom_call.1} parent=1 // pred_region
      %s38 = ssub.s32 2048, 2048
      %39 = vsyncadd [#allocation6], %s38
      %s40 = sshll.u32 [#allocation7], 4
      %s41 = int_to_ptr.vmem [resolvable:$true] %s40
      %46 = dma.hbm_to_vmem [thread:$0]  %s2, 2048, %s41, [#allocation6], 128, 128, 8
    $region13: #{tpu_custom_call.1} parent=1 // pred_fallthru
      _
    // Predicated region
    $region14: #{tpu_custom_call.1} parent=1 // pred_check
      _
    $region15: #{tpu_custom_call.1} parent=1 // pred_check_branch
      %48 = sbr.rel (0) target = $region17
    $region16: #{tpu_custom_call.1} parent=1 // pred_region
      %49 = dma.done [#allocation3], 2048
    $region17: #{tpu_custom_call.1} parent=1 // pred_fallthru
      _
    // Predicated region
    $region18: #{tpu_custom_call.1} parent=1 // pred_check
      _
    $region19: #{tpu_custom_call.1} parent=1 // pred_check_branch
      %51 = sbr.rel (0) target = $region21
    $region20: #{tpu_custom_call.1} parent=1 // pred_region
      %52 = dma.done [#allocation6], 2048
    $region21: #{tpu_custom_call.1} parent=1 // pred_fallthru
      _
    // Predicated region
    $region22: #{tpu_custom_call.1} parent=1 // pred_check
      _
    $region23: #{tpu_custom_call.1} parent=1 // pred_check_branch
      %54 = sbr.rel (0) target = $region25
    $region24: #{tpu_custom_call.1} parent=1 // pred_region
      %55 = dma.done [#allocation6], 2048
    $region25: #{tpu_custom_call.1} parent=1 // pred_fallthru
      _
    %v56 = vld [vmem:[#allocation2] sm:$0xff]
    %v57 = vld [vmem:[#allocation2 + $0x8] sm:$0xff]
    %v58 = vld [vmem:[#allocation2 + $0x10] sm:$0xff]
    %v59 = vld [vmem:[#allocation2 + $0x18] sm:$0xff]
    %v60 = vld [vmem:[#allocation2 + $0x20] sm:$0xff]
    %v61 = vld [vmem:[#allocation2 + $0x28] sm:$0xff]
    %v62 = vld [vmem:[#allocation2 + $0x30] sm:$0xff]
    %v63 = vld [vmem:[#allocation2 + $0x38] sm:$0xff]
    %v64 = vld [vmem:[#allocation2 + $0x40] sm:$0xff]
    %v65 = vld [vmem:[#allocation2 + $0x48] sm:$0xff]
    %v66 = vld [vmem:[#allocation2 + $0x50] sm:$0xff]
    %v67 = vld [vmem:[#allocation2 + $0x58] sm:$0xff]
    %v68 = vld [vmem:[#allocation2 + $0x60] sm:$0xff]
    %v69 = vld [vmem:[#allocation2 + $0x68] sm:$0xff]
    %v70 = vld [vmem:[#allocation2 + $0x70] sm:$0xff]
    %v71 = vld [vmem:[#allocation2 + $0x78] sm:$0xff]
    %v72 = vld [vmem:[#allocation5] sm:$0xff]
    %v73 = vld [vmem:[#allocation5 + $0x8] sm:$0xff]
    %v74 = vld [vmem:[#allocation5 + $0x10] sm:$0xff]
    %v75 = vld [vmem:[#allocation5 + $0x18] sm:$0xff]
    %v76 = vld [vmem:[#allocation5 + $0x20] sm:$0xff]
    %v77 = vld [vmem:[#allocation5 + $0x28] sm:$0xff]
    %v78 = vld [vmem:[#allocation5 + $0x30] sm:$0xff]
    %v79 = vld [vmem:[#allocation5 + $0x38] sm:$0xff]
    %v80 = vld [vmem:[#allocation5 + $0x40] sm:$0xff]
    %v81 = vld [vmem:[#allocation5 + $0x48] sm:$0xff]
    %v82 = vld [vmem:[#allocation5 + $0x50] sm:$0xff]
    %v83 = vld [vmem:[#allocation5 + $0x58] sm:$0xff]
    %v84 = vld [vmem:[#allocation5 + $0x60] sm:$0xff]
    %v85 = vld [vmem:[#allocation5 + $0x68] sm:$0xff]
    %v86 = vld [vmem:[#allocation5 + $0x70] sm:$0xff]
    %v87 = vld [vmem:[#allocation5 + $0x78] sm:$0xff]
    %v88 = vld [vmem:[#allocation7] sm:$0xff]
    %v89 = vld [vmem:[#allocation7 + $0x8] sm:$0xff]
    %v90 = vld [vmem:[#allocation7 + $0x10] sm:$0xff]
    %v91 = vld [vmem:[#allocation7 + $0x18] sm:$0xff]
    %v92 = vld [vmem:[#allocation7 + $0x20] sm:$0xff]
    %v93 = vld [vmem:[#allocation7 + $0x28] sm:$0xff]
    %v94 = vld [vmem:[#allocation7 + $0x30] sm:$0xff]
    %v95 = vld [vmem:[#allocation7 + $0x38] sm:$0xff]
    %v96 = vld [vmem:[#allocation7 + $0x40] sm:$0xff]
    %v97 = vld [vmem:[#allocation7 + $0x48] sm:$0xff]
    %v98 = vld [vmem:[#allocation7 + $0x50] sm:$0xff]
    %v99 = vld [vmem:[#allocation7 + $0x58] sm:$0xff]
    %v100 = vld [vmem:[#allocation7 + $0x60] sm:$0xff]
    %v101 = vld [vmem:[#allocation7 + $0x68] sm:$0xff]
    %v102 = vld [vmem:[#allocation7 + $0x70] sm:$0xff]
    %v103 = vld [vmem:[#allocation7 + $0x78] sm:$0xff]
    %vm104 = vcmask 261120
    %v106 = vsel %vm104, %v56, 0
    %v109 = vsel %vm104, %v72, 0
    %111 = vmatprep.subr.mxu0 0.0
    %112 = vmatpush1.xpose.msra.mxu0 0.0
    %113 = vmatprep.subr.mxu0 0.0
    %114 = vmatpush1.xpose.msra.mxu0 0.0
    %115 = vmatprep.subr.mxu0 0.0
    %116 = vmatpush1.xpose.msra.mxu0 0.0
    %117 = vmatprep.subr.mxu0 0.0
    %118 = vmatpush1.xpose.msra.mxu0 0.0
    %119 = vmatprep.subr.mxu0 0.0
    %120 = vmatpush1.xpose.msra.mxu0 0.0
    %121 = vmatprep.subr.mxu0 0.0
    %122 = vmatpush1.xpose.msra.mxu0 0.0
    %123 = vmatprep.subr.mxu0 0.0
    %124 = vmatpush1.xpose.msra.mxu0 0.0
    %125 = vmatprep.subr.mxu0 0.0
    %126 = vmatpush1.xpose.msra.mxu0 0.0
    %127 = vmatprep.subr.mxu0 0.0
    %128 = vmatpush1.xpose.msra.mxu0 0.0
    %129 = vmatprep.subr.mxu0 0.0
    %130 = vmatpush1.xpose.msra.mxu0 0.0
    %131 = vmatprep.subr.mxu0 0.0
    %132 = vmatpush1.xpose.msra.mxu0 0.0
    %133 = vmatprep.subr.mxu0 0.0
    %134 = vmatpush1.xpose.msra.mxu0 0.0
    %135 = vmatprep.subr.mxu0 0.0
    %136 = vmatpush1.xpose.msra.mxu0 0.0
    %137 = vmatprep.subr.mxu0 0.0
    %138 = vmatpush1.xpose.msra.mxu0 0.0
    %139 = vmatprep.subr.mxu0 0.0
    %140 = vmatpush1.xpose.msra.mxu0 0.0
    %141 = vmatprep.subr.mxu0 0.0
    %142 = vmatpush1.xpose.msra.mxu0 %v109
    %143 = vmatprep.subr.mxu0 0.0
    %144 = vmatpush2.xpose.msra.mxu0 0.0
    %145 = vmatprep.subr.mxu0 0.0
    %146 = vmatpush2.xpose.msra.mxu0 0.0
    %147 = vmatprep.subr.mxu0 0.0
    %148 = vmatpush2.xpose.msra.mxu0 0.0
    %149 = vmatprep.subr.mxu0 0.0
    %150 = vmatpush2.xpose.msra.mxu0 0.0
    %151 = vmatprep.subr.mxu0 0.0
    %152 = vmatpush2.xpose.msra.mxu0 0.0
    %153 = vmatprep.subr.mxu0 0.0
    %154 = vmatpush2.xpose.msra.mxu0 0.0
    %155 = vmatprep.subr.mxu0 0.0
    %156 = vmatpush2.xpose.msra.mxu0 0.0
    %157 = vmatprep.subr.mxu0 0.0
    %158 = vmatpush2.xpose.msra.mxu0 0.0
    %159 = vmatprep.subr.mxu0 0.0
    %160 = vmatpush2.xpose.msra.mxu0 0.0
    %161 = vmatprep.subr.mxu0 0.0
    %162 = vmatpush2.xpose.msra.mxu0 0.0
    %163 = vmatprep.subr.mxu0 0.0
    %164 = vmatpush2.xpose.msra.mxu0 0.0
    %165 = vmatprep.subr.mxu0 0.0
    %166 = vmatpush2.xpose.msra.mxu0 0.0
    %167 = vmatprep.subr.mxu0 0.0
    %168 = vmatpush2.xpose.msra.mxu0 0.0
    %169 = vmatprep.subr.mxu0 0.0
    %170 = vmatpush2.xpose.msra.mxu0 0.0
    %171 = vmatprep.subr.mxu0 0.0
    %172 = vmatpush2.xpose.msra.mxu0 0.0
    %173 = vmatprep.subr.mxu0 0.0
    %174 = vmatpush2.xpose.msra.mxu0 0.0
    %175 = vmatprep.mubr.f32.mxu0 0.0
    %176 = vmatmul.mubr.f32.gmra.mxu0 %v106
    %v177 = vpop.f32.mrf.mxu0
    %v178 = vadd.f32 0.0, %v177
    %v179 = vpop.f32.mrf.mxu0
    %180 = vdwg.mxu0
    %v182 = vsel %vm104, %v57, 0
    %v185 = vsel %vm104, %v73, 0
    %187 = vmatprep.subr.mxu0 0.0
    %188 = vmatpush1.xpose.msra.mxu0 0.0
    %189 = vmatprep.subr.mxu0 0.0
    %190 = vmatpush1.xpose.msra.mxu0 0.0
    %191 = vmatprep.subr.mxu0 0.0
    %192 = vmatpush1.xpose.msra.mxu0 0.0
    %193 = vmatprep.subr.mxu0 0.0
    %194 = vmatpush1.xpose.msra.mxu0 0.0
    %195 = vmatprep.subr.mxu0 0.0
    %196 = vmatpush1.xpose.msra.mxu0 0.0
    %197 = vmatprep.subr.mxu0 0.0
    %198 = vmatpush1.xpose.msra.mxu0 0.0
    %199 = vmatprep.subr.mxu0 0.0
    %200 = vmatpush1.xpose.msra.mxu0 0.0
    %201 = vmatprep.subr.mxu0 0.0
    %202 = vmatpush1.xpose.msra.mxu0 0.0
    %203 = vmatprep.subr.mxu0 0.0
    %204 = vmatpush1.xpose.msra.mxu0 0.0
    %205 = vmatprep.subr.mxu0 0.0
    %206 = vmatpush1.xpose.msra.mxu0 0.0
    %207 = vmatprep.subr.mxu0 0.0
    %208 = vmatpush1.xpose.msra.mxu0 0.0
    %209 = vmatprep.subr.mxu0 0.0
    %210 = vmatpush1.xpose.msra.mxu0 0.0
    %211 = vmatprep.subr.mxu0 0.0
    %212 = vmatpush1.xpose.msra.mxu0 0.0
    %213 = vmatprep.subr.mxu0 0.0
    %214 = vmatpush1.xpose.msra.mxu0 0.0
    %215 = vmatprep.subr.mxu0 0.0
    %216 = vmatpush1.xpose.msra.mxu0 0.0
    %217 = vmatprep.subr.mxu0 0.0
    %218 = vmatpush1.xpose.msra.mxu0 %v185
    %219 = vmatprep.subr.mxu0 0.0
    %220 = vmatpush2.xpose.msra.mxu0 0.0
    %221 = vmatprep.subr.mxu0 0.0
    %222 = vmatpush2.xpose.msra.mxu0 0.0
    %223 = vmatprep.subr.mxu0 0.0
    %224 = vmatpush2.xpose.msra.mxu0 0.0
    %225 = vmatprep.subr.mxu0 0.0
    %226 = vmatpush2.xpose.msra.mxu0 0.0
    %227 = vmatprep.subr.mxu0 0.0
    %228 = vmatpush2.xpose.msra.mxu0 0.0
    %229 = vmatprep.subr.mxu0 0.0
    %230 = vmatpush2.xpose.msra.mxu0 0.0
    %231 = vmatprep.subr.mxu0 0.0
    %232 = vmatpush2.xpose.msra.mxu0 0.0
    %233 = vmatprep.subr.mxu0 0.0
    %234 = vmatpush2.xpose.msra.mxu0 0.0
    %235 = vmatprep.subr.mxu0 0.0
    %236 = vmatpush2.xpose.msra.mxu0 0.0
    %237 = vmatprep.subr.mxu0 0.0
    %238 = vmatpush2.xpose.msra.mxu0 0.0
    %239 = vmatprep.subr.mxu0 0.0
    %240 = vmatpush2.xpose.msra.mxu0 0.0
    %241 = vmatprep.subr.mxu0 0.0
    %242 = vmatpush2.xpose.msra.mxu0 0.0
    %243 = vmatprep.subr.mxu0 0.0
    %244 = vmatpush2.xpose.msra.mxu0 0.0
    %245 = vmatprep.subr.mxu0 0.0
    %246 = vmatpush2.xpose.msra.mxu0 0.0
    %247 = vmatprep.subr.mxu0 0.0
    %248 = vmatpush2.xpose.msra.mxu0 0.0
    %249 = vmatprep.subr.mxu0 0.0
    %250 = vmatpush2.xpose.msra.mxu0 0.0
    %251 = vmatprep.mubr.f32.mxu0 0.0
    %252 = vmatmul.mubr.f32.gmra.mxu0 %v182
    %v253 = vpop.f32.mrf.mxu0
    %v254 = vadd.f32 0.0, %v253
    %v255 = vpop.f32.mrf.mxu0
    %256 = vdwg.mxu0
    %v258 = vsel %vm104, %v58, 0
    %v261 = vsel %vm104, %v74, 0
    %263 = vmatprep.subr.mxu0 0.0
    %264 = vmatpush1.xpose.msra.mxu0 0.0
    %265 = vmatprep.subr.mxu0 0.0
    %266 = vmatpush1.xpose.msra.mxu0 0.0
    %267 = vmatprep.subr.mxu0 0.0
    %268 = vmatpush1.xpose.msra.mxu0 0.0
    %269 = vmatprep.subr.mxu0 0.0
    %270 = vmatpush1.xpose.msra.mxu0 0.0
    %271 = vmatprep.subr.mxu0 0.0
    %272 = vmatpush1.xpose.msra.mxu0 0.0
    %273 = vmatprep.subr.mxu0 0.0
    %274 = vmatpush1.xpose.msra.mxu0 0.0
    %275 = vmatprep.subr.mxu0 0.0
    %276 = vmatpush1.xpose.msra.mxu0 0.0
    %277 = vmatprep.subr.mxu0 0.0
    %278 = vmatpush1.xpose.msra.mxu0 0.0
    %279 = vmatprep.subr.mxu0 0.0
    %280 = vmatpush1.xpose.msra.mxu0 0.0
    %281 = vmatprep.subr.mxu0 0.0
    %282 = vmatpush1.xpose.msra.mxu0 0.0
    %283 = vmatprep.subr.mxu0 0.0
    %284 = vmatpush1.xpose.msra.mxu0 0.0
    %285 = vmatprep.subr.mxu0 0.0
    %286 = vmatpush1.xpose.msra.mxu0 0.0
    %287 = vmatprep.subr.mxu0 0.0
    %288 = vmatpush1.xpose.msra.mxu0 0.0
    %289 = vmatprep.subr.mxu0 0.0
    %290 = vmatpush1.xpose.msra.mxu0 0.0
    %291 = vmatprep.subr.mxu0 0.0
    %292 = vmatpush1.xpose.msra.mxu0 0.0
    %293 = vmatprep.subr.mxu0 0.0
    %294 = vmatpush1.xpose.msra.mxu0 %v261
    %295 = vmatprep.subr.mxu0 0.0
    %296 = vmatpush2.xpose.msra.mxu0 0.0
    %297 = vmatprep.subr.mxu0 0.0
    %298 = vmatpush2.xpose.msra.mxu0 0.0
    %299 = vmatprep.subr.mxu0 0.0
    %300 = vmatpush2.xpose.msra.mxu0 0.0
    %301 = vmatprep.subr.mxu0 0.0
    %302 = vmatpush2.xpose.msra.mxu0 0.0
    %303 = vmatprep.subr.mxu0 0.0
    %304 = vmatpush2.xpose.msra.mxu0 0.0
    %305 = vmatprep.subr.mxu0 0.0
    %306 = vmatpush2.xpose.msra.mxu0 0.0
    %307 = vmatprep.subr.mxu0 0.0
    %308 = vmatpush2.xpose.msra.mxu0 0.0
    %309 = vmatprep.subr.mxu0 0.0
    %310 = vmatpush2.xpose.msra.mxu0 0.0
    %311 = vmatprep.subr.mxu0 0.0
    %312 = vmatpush2.xpose.msra.mxu0 0.0
    %313 = vmatprep.subr.mxu0 0.0
    %314 = vmatpush2.xpose.msra.mxu0 0.0
    %315 = vmatprep.subr.mxu0 0.0
    %316 = vmatpush2.xpose.msra.mxu0 0.0
    %317 = vmatprep.subr.mxu0 0.0
    %318 = vmatpush2.xpose.msra.mxu0 0.0
    %319 = vmatprep.subr.mxu0 0.0
    %320 = vmatpush2.xpose.msra.mxu0 0.0
    %321 = vmatprep.subr.mxu0 0.0
    %322 = vmatpush2.xpose.msra.mxu0 0.0
    %323 = vmatprep.subr.mxu0 0.0
    %324 = vmatpush2.xpose.msra.mxu0 0.0
    %325 = vmatprep.subr.mxu0 0.0
    %326 = vmatpush2.xpose.msra.mxu0 0.0
    %327 = vmatprep.mubr.f32.mxu0 0.0
    %328 = vmatmul.mubr.f32.gmra.mxu0 %v258
    %v329 = vpop.f32.mrf.mxu0
    %v330 = vadd.f32 0.0, %v329
    %v331 = vpop.f32.mrf.mxu0
    %332 = vdwg.mxu0
    %v334 = vsel %vm104, %v59, 0
    %v337 = vsel %vm104, %v75, 0
    %339 = vmatprep.subr.mxu0 0.0
    %340 = vmatpush1.xpose.msra.mxu0 0.0
    %341 = vmatprep.subr.mxu0 0.0
    %342 = vmatpush1.xpose.msra.mxu0 0.0
    %343 = vmatprep.subr.mxu0 0.0
    %344 = vmatpush1.xpose.msra.mxu0 0.0
    %345 = vmatprep.subr.mxu0 0.0
    %346 = vmatpush1.xpose.msra.mxu0 0.0
    %347 = vmatprep.subr.mxu0 0.0
    %348 = vmatpush1.xpose.msra.mxu0 0.0
    %349 = vmatprep.subr.mxu0 0.0
    %350 = vmatpush1.xpose.msra.mxu0 0.0
    %351 = vmatprep.subr.mxu0 0.0
    %352 = vmatpush1.xpose.msra.mxu0 0.0
    %353 = vmatprep.subr.mxu0 0.0
    %354 = vmatpush1.xpose.msra.mxu0 0.0
    %355 = vmatprep.subr.mxu0 0.0
    %356 = vmatpush1.xpose.msra.mxu0 0.0
    %357 = vmatprep.subr.mxu0 0.0
    %358 = vmatpush1.xpose.msra.mxu0 0.0
    %359 = vmatprep.subr.mxu0 0.0
    %360 = vmatpush1.xpose.msra.mxu0 0.0
    %361 = vmatprep.subr.mxu0 0.0
    %362 = vmatpush1.xpose.msra.mxu0 0.0
    %363 = vmatprep.subr.mxu0 0.0
    %364 = vmatpush1.xpose.msra.mxu0 0.0
    %365 = vmatprep.subr.mxu0 0.0
    %366 = vmatpush1.xpose.msra.mxu0 0.0
    %367 = vmatprep.subr.mxu0 0.0
    %368 = vmatpush1.xpose.msra.mxu0 0.0
    %369 = vmatprep.subr.mxu0 0.0
    %370 = vmatpush1.xpose.msra.mxu0 %v337
    %371 = vmatprep.subr.mxu0 0.0
    %372 = vmatpush2.xpose.msra.mxu0 0.0
    %373 = vmatprep.subr.mxu0 0.0
    %374 = vmatpush2.xpose.msra.mxu0 0.0
    %375 = vmatprep.subr.mxu0 0.0
    %376 = vmatpush2.xpose.msra.mxu0 0.0
    %377 = vmatprep.subr.mxu0 0.0
    %378 = vmatpush2.xpose.msra.mxu0 0.0
    %379 = vmatprep.subr.mxu0 0.0
    %380 = vmatpush2.xpose.msra.mxu0 0.0
    %381 = vmatprep.subr.mxu0 0.0
    %382 = vmatpush2.xpose.msra.mxu0 0.0
    %383 = vmatprep.subr.mxu0 0.0
    %384 = vmatpush2.xpose.msra.mxu0 0.0
    %385 = vmatprep.subr.mxu0 0.0
    %386 = vmatpush2.xpose.msra.mxu0 0.0
    %387 = vmatprep.subr.mxu0 0.0
    %388 = vmatpush2.xpose.msra.mxu0 0.0
    %389 = vmatprep.subr.mxu0 0.0
    %390 = vmatpush2.xpose.msra.mxu0 0.0
    %391 = vmatprep.subr.mxu0 0.0
    %392 = vmatpush2.xpose.msra.mxu0 0.0
    %393 = vmatprep.subr.mxu0 0.0
    %394 = vmatpush2.xpose.msra.mxu0 0.0
    %395 = vmatprep.subr.mxu0 0.0
    %396 = vmatpush2.xpose.msra.mxu0 0.0
    %397 = vmatprep.subr.mxu0 0.0
    %398 = vmatpush2.xpose.msra.mxu0 0.0
    %399 = vmatprep.subr.mxu0 0.0
    %400 = vmatpush2.xpose.msra.mxu0 0.0
    %401 = vmatprep.subr.mxu0 0.0
    %402 = vmatpush2.xpose.msra.mxu0 0.0
    %403 = vmatprep.mubr.f32.mxu0 0.0
    %404 = vmatmul.mubr.f32.gmra.mxu0 %v334
    %v405 = vpop.f32.mrf.mxu0
    %v406 = vadd.f32 0.0, %v405
    %v407 = vpop.f32.mrf.mxu0
    %408 = vdwg.mxu0
    %v410 = vsel %vm104, %v60, 0
    %v413 = vsel %vm104, %v76, 0
    %415 = vmatprep.subr.mxu0 0.0
    %416 = vmatpush1.xpose.msra.mxu0 0.0
    %417 = vmatprep.subr.mxu0 0.0
    %418 = vmatpush1.xpose.msra.mxu0 0.0
    %419 = vmatprep.subr.mxu0 0.0
    %420 = vmatpush1.xpose.msra.mxu0 0.0
    %421 = vmatprep.subr.mxu0 0.0
    %422 = vmatpush1.xpose.msra.mxu0 0.0
    %423 = vmatprep.subr.mxu0 0.0
    %424 = vmatpush1.xpose.msra.mxu0 0.0
    %425 = vmatprep.subr.mxu0 0.0
    %426 = vmatpush1.xpose.msra.mxu0 0.0
    %427 = vmatprep.subr.mxu0 0.0
    %428 = vmatpush1.xpose.msra.mxu0 0.0
    %429 = vmatprep.subr.mxu0 0.0
    %430 = vmatpush1.xpose.msra.mxu0 0.0
    %431 = vmatprep.subr.mxu0 0.0
    %432 = vmatpush1.xpose.msra.mxu0 0.0
    %433 = vmatprep.subr.mxu0 0.0
    %434 = vmatpush1.xpose.msra.mxu0 0.0
    %435 = vmatprep.subr.mxu0 0.0
    %436 = vmatpush1.xpose.msra.mxu0 0.0
    %437 = vmatprep.subr.mxu0 0.0
    %438 = vmatpush1.xpose.msra.mxu0 0.0
    %439 = vmatprep.subr.mxu0 0.0
    %440 = vmatpush1.xpose.msra.mxu0 0.0
    %441 = vmatprep.subr.mxu0 0.0
    %442 = vmatpush1.xpose.msra.mxu0 0.0
    %443 = vmatprep.subr.mxu0 0.0
    %444 = vmatpush1.xpose.msra.mxu0 0.0
    %445 = vmatprep.subr.mxu0 0.0
    %446 = vmatpush1.xpose.msra.mxu0 %v413
    %447 = vmatprep.subr.mxu0 0.0
    %448 = vmatpush2.xpose.msra.mxu0 0.0
    %449 = vmatprep.subr.mxu0 0.0
    %450 = vmatpush2.xpose.msra.mxu0 0.0
    %451 = vmatprep.subr.mxu0 0.0
    %452 = vmatpush2.xpose.msra.mxu0 0.0
    %453 = vmatprep.subr.mxu0 0.0
    %454 = vmatpush2.xpose.msra.mxu0 0.0
    %455 = vmatprep.subr.mxu0 0.0
    %456 = vmatpush2.xpose.msra.mxu0 0.0
    %457 = vmatprep.subr.mxu0 0.0
    %458 = vmatpush2.xpose.msra.mxu0 0.0
    %459 = vmatprep.subr.mxu0 0.0
    %460 = vmatpush2.xpose.msra.mxu0 0.0
    %461 = vmatprep.subr.mxu0 0.0
    %462 = vmatpush2.xpose.msra.mxu0 0.0
    %463 = vmatprep.subr.mxu0 0.0
    %464 = vmatpush2.xpose.msra.mxu0 0.0
    %465 = vmatprep.subr.mxu0 0.0
    %466 = vmatpush2.xpose.msra.mxu0 0.0
    %467 = vmatprep.subr.mxu0 0.0
    %468 = vmatpush2.xpose.msra.mxu0 0.0
    %469 = vmatprep.subr.mxu0 0.0
    %470 = vmatpush2.xpose.msra.mxu0 0.0
    %471 = vmatprep.subr.mxu0 0.0
    %472 = vmatpush2.xpose.msra.mxu0 0.0
    %473 = vmatprep.subr.mxu0 0.0
    %474 = vmatpush2.xpose.msra.mxu0 0.0
    %475 = vmatprep.subr.mxu0 0.0
    %476 = vmatpush2.xpose.msra.mxu0 0.0
    %477 = vmatprep.subr.mxu0 0.0
    %478 = vmatpush2.xpose.msra.mxu0 0.0
    %479 = vmatprep.mubr.f32.mxu0 0.0
    %480 = vmatmul.mubr.f32.gmra.mxu0 %v410
    %v481 = vpop.f32.mrf.mxu0
    %v482 = vadd.f32 0.0, %v481
    %v483 = vpop.f32.mrf.mxu0
    %484 = vdwg.mxu0
    %v486 = vsel %vm104, %v61, 0
    %v489 = vsel %vm104, %v77, 0
    %491 = vmatprep.subr.mxu0 0.0
    %492 = vmatpush1.xpose.msra.mxu0 0.0
    %493 = vmatprep.subr.mxu0 0.0
    %494 = vmatpush1.xpose.msra.mxu0 0.0
    %495 = vmatprep.subr.mxu0 0.0
    %496 = vmatpush1.xpose.msra.mxu0 0.0
    %497 = vmatprep.subr.mxu0 0.0
    %498 = vmatpush1.xpose.msra.mxu0 0.0
    %499 = vmatprep.subr.mxu0 0.0
    %500 = vmatpush1.xpose.msra.mxu0 0.0
    %501 = vmatprep.subr.mxu0 0.0
    %502 = vmatpush1.xpose.msra.mxu0 0.0
    %503 = vmatprep.subr.mxu0 0.0
    %504 = vmatpush1.xpose.msra.mxu0 0.0
    %505 = vmatprep.subr.mxu0 0.0
    %506 = vmatpush1.xpose.msra.mxu0 0.0
    %507 = vmatprep.subr.mxu0 0.0
    %508 = vmatpush1.xpose.msra.mxu0 0.0
    %509 = vmatprep.subr.mxu0 0.0
    %510 = vmatpush1.xpose.msra.mxu0 0.0
    %511 = vmatprep.subr.mxu0 0.0
    %512 = vmatpush1.xpose.msra.mxu0 0.0
    %513 = vmatprep.subr.mxu0 0.0
    %514 = vmatpush1.xpose.msra.mxu0 0.0
    %515 = vmatprep.subr.mxu0 0.0
    %516 = vmatpush1.xpose.msra.mxu0 0.0
    %517 = vmatprep.subr.mxu0 0.0
    %518 = vmatpush1.xpose.msra.mxu0 0.0
    %519 = vmatprep.subr.mxu0 0.0
    %520 = vmatpush1.xpose.msra.mxu0 0.0
    %521 = vmatprep.subr.mxu0 0.0
    %522 = vmatpush1.xpose.msra.mxu0 %v489
    %523 = vmatprep.subr.mxu0 0.0
    %524 = vmatpush2.xpose.msra.mxu0 0.0
    %525 = vmatprep.subr.mxu0 0.0
    %526 = vmatpush2.xpose.msra.mxu0 0.0
    %527 = vmatprep.subr.mxu0 0.0
    %528 = vmatpush2.xpose.msra.mxu0 0.0
    %529 = vmatprep.subr.mxu0 0.0
    %530 = vmatpush2.xpose.msra.mxu0 0.0
    %531 = vmatprep.subr.mxu0 0.0
    %532 = vmatpush2.xpose.msra.mxu0 0.0
    %533 = vmatprep.subr.mxu0 0.0
    %534 = vmatpush2.xpose.msra.mxu0 0.0
    %535 = vmatprep.subr.mxu0 0.0
    %536 = vmatpush2.xpose.msra.mxu0 0.0
    %537 = vmatprep.subr.mxu0 0.0
    %538 = vmatpush2.xpose.msra.mxu0 0.0
    %539 = vmatprep.subr.mxu0 0.0
    %540 = vmatpush2.xpose.msra.mxu0 0.0
    %541 = vmatprep.subr.mxu0 0.0
    %542 = vmatpush2.xpose.msra.mxu0 0.0
    %543 = vmatprep.subr.mxu0 0.0
    %544 = vmatpush2.xpose.msra.mxu0 0.0
    %545 = vmatprep.subr.mxu0 0.0
    %546 = vmatpush2.xpose.msra.mxu0 0.0
    %547 = vmatprep.subr.mxu0 0.0
    %548 = vmatpush2.xpose.msra.mxu0 0.0
    %549 = vmatprep.subr.mxu0 0.0
    %550 = vmatpush2.xpose.msra.mxu0 0.0
    %551 = vmatprep.subr.mxu0 0.0
    %552 = vmatpush2.xpose.msra.mxu0 0.0
    %553 = vmatprep.subr.mxu0 0.0
    %554 = vmatpush2.xpose.msra.mxu0 0.0
    %555 = vmatprep.mubr.f32.mxu0 0.0
    %556 = vmatmul.mubr.f32.gmra.mxu0 %v486
    %v557 = vpop.f32.mrf.mxu0
    %v558 = vadd.f32 0.0, %v557
    %v559 = vpop.f32.mrf.mxu0
    %560 = vdwg.mxu0
    %v562 = vsel %vm104, %v62, 0
    %v565 = vsel %vm104, %v78, 0
    %567 = vmatprep.subr.mxu0 0.0
    %568 = vmatpush1.xpose.msra.mxu0 0.0
    %569 = vmatprep.subr.mxu0 0.0
    %570 = vmatpush1.xpose.msra.mxu0 0.0
    %571 = vmatprep.subr.mxu0 0.0
    %572 = vmatpush1.xpose.msra.mxu0 0.0
    %573 = vmatprep.subr.mxu0 0.0
    %574 = vmatpush1.xpose.msra.mxu0 0.0
    %575 = vmatprep.subr.mxu0 0.0
    %576 = vmatpush1.xpose.msra.mxu0 0.0
    %577 = vmatprep.subr.mxu0 0.0
    %578 = vmatpush1.xpose.msra.mxu0 0.0
    %579 = vmatprep.subr.mxu0 0.0
    %580 = vmatpush1.xpose.msra.mxu0 0.0
    %581 = vmatprep.subr.mxu0 0.0
    %582 = vmatpush1.xpose.msra.mxu0 0.0
    %583 = vmatprep.subr.mxu0 0.0
    %584 = vmatpush1.xpose.msra.mxu0 0.0
    %585 = vmatprep.subr.mxu0 0.0
    %586 = vmatpush1.xpose.msra.mxu0 0.0
    %587 = vmatprep.subr.mxu0 0.0
    %588 = vmatpush1.xpose.msra.mxu0 0.0
    %589 = vmatprep.subr.mxu0 0.0
    %590 = vmatpush1.xpose.msra.mxu0 0.0
    %591 = vmatprep.subr.mxu0 0.0
    %592 = vmatpush1.xpose.msra.mxu0 0.0
    %593 = vmatprep.subr.mxu0 0.0
    %594 = vmatpush1.xpose.msra.mxu0 0.0
    %595 = vmatprep.subr.mxu0 0.0
    %596 = vmatpush1.xpose.msra.mxu0 0.0
    %597 = vmatprep.subr.mxu0 0.0
    %598 = vmatpush1.xpose.msra.mxu0 %v565
    %599 = vmatprep.subr.mxu0 0.0
    %600 = vmatpush2.xpose.msra.mxu0 0.0
    %601 = vmatprep.subr.mxu0 0.0
    %602 = vmatpush2.xpose.msra.mxu0 0.0
    %603 = vmatprep.subr.mxu0 0.0
    %604 = vmatpush2.xpose.msra.mxu0 0.0
    %605 = vmatprep.subr.mxu0 0.0
    %606 = vmatpush2.xpose.msra.mxu0 0.0
    %607 = vmatprep.subr.mxu0 0.0
    %608 = vmatpush2.xpose.msra.mxu0 0.0
    %609 = vmatprep.subr.mxu0 0.0
    %610 = vmatpush2.xpose.msra.mxu0 0.0
    %611 = vmatprep.subr.mxu0 0.0
    %612 = vmatpush2.xpose.msra.mxu0 0.0
    %613 = vmatprep.subr.mxu0 0.0
    %614 = vmatpush2.xpose.msra.mxu0 0.0
    %615 = vmatprep.subr.mxu0 0.0
    %616 = vmatpush2.xpose.msra.mxu0 0.0
    %617 = vmatprep.subr.mxu0 0.0
    %618 = vmatpush2.xpose.msra.mxu0 0.0
    %619 = vmatprep.subr.mxu0 0.0
    %620 = vmatpush2.xpose.msra.mxu0 0.0
    %621 = vmatprep.subr.mxu0 0.0
    %622 = vmatpush2.xpose.msra.mxu0 0.0
    %623 = vmatprep.subr.mxu0 0.0
    %624 = vmatpush2.xpose.msra.mxu0 0.0
    %625 = vmatprep.subr.mxu0 0.0
    %626 = vmatpush2.xpose.msra.mxu0 0.0
    %627 = vmatprep.subr.mxu0 0.0
    %628 = vmatpush2.xpose.msra.mxu0 0.0
    %629 = vmatprep.subr.mxu0 0.0
    %630 = vmatpush2.xpose.msra.mxu0 0.0
    %631 = vmatprep.mubr.f32.mxu0 0.0
    %632 = vmatmul.mubr.f32.gmra.mxu0 %v562
    %v633 = vpop.f32.mrf.mxu0
    %v634 = vadd.f32 0.0, %v633
    %v635 = vpop.f32.mrf.mxu0
    %636 = vdwg.mxu0
    %v638 = vsel %vm104, %v63, 0
    %v641 = vsel %vm104, %v79, 0
    %643 = vmatprep.subr.mxu0 0.0
    %644 = vmatpush1.xpose.msra.mxu0 0.0
    %645 = vmatprep.subr.mxu0 0.0
    %646 = vmatpush1.xpose.msra.mxu0 0.0
    %647 = vmatprep.subr.mxu0 0.0
    %648 = vmatpush1.xpose.msra.mxu0 0.0
    %649 = vmatprep.subr.mxu0 0.0
    %650 = vmatpush1.xpose.msra.mxu0 0.0
    %651 = vmatprep.subr.mxu0 0.0
    %652 = vmatpush1.xpose.msra.mxu0 0.0
    %653 = vmatprep.subr.mxu0 0.0
    %654 = vmatpush1.xpose.msra.mxu0 0.0
    %655 = vmatprep.subr.mxu0 0.0
    %656 = vmatpush1.xpose.msra.mxu0 0.0
    %657 = vmatprep.subr.mxu0 0.0
    %658 = vmatpush1.xpose.msra.mxu0 0.0
    %659 = vmatprep.subr.mxu0 0.0
    %660 = vmatpush1.xpose.msra.mxu0 0.0
    %661 = vmatprep.subr.mxu0 0.0
    %662 = vmatpush1.xpose.msra.mxu0 0.0
    %663 = vmatprep.subr.mxu0 0.0
    %664 = vmatpush1.xpose.msra.mxu0 0.0
    %665 = vmatprep.subr.mxu0 0.0
    %666 = vmatpush1.xpose.msra.mxu0 0.0
    %667 = vmatprep.subr.mxu0 0.0
    %668 = vmatpush1.xpose.msra.mxu0 0.0
    %669 = vmatprep.subr.mxu0 0.0
    %670 = vmatpush1.xpose.msra.mxu0 0.0
    %671 = vmatprep.subr.mxu0 0.0
    %672 = vmatpush1.xpose.msra.mxu0 0.0
    %673 = vmatprep.subr.mxu0 0.0
    %674 = vmatpush1.xpose.msra.mxu0 %v641
    %675 = vmatprep.subr.mxu0 0.0
    %676 = vmatpush2.xpose.msra.mxu0 0.0
    %677 = vmatprep.subr.mxu0 0.0
    %678 = vmatpush2.xpose.msra.mxu0 0.0
    %679 = vmatprep.subr.mxu0 0.0
    %680 = vmatpush2.xpose.msra.mxu0 0.0
    %681 = vmatprep.subr.mxu0 0.0
    %682 = vmatpush2.xpose.msra.mxu0 0.0
    %683 = vmatprep.subr.mxu0 0.0
    %684 = vmatpush2.xpose.msra.mxu0 0.0
    %685 = vmatprep.subr.mxu0 0.0
    %686 = vmatpush2.xpose.msra.mxu0 0.0
    %687 = vmatprep.subr.mxu0 0.0
    %688 = vmatpush2.xpose.msra.mxu0 0.0
    %689 = vmatprep.subr.mxu0 0.0
    %690 = vmatpush2.xpose.msra.mxu0 0.0
    %691 = vmatprep.subr.mxu0 0.0
    %692 = vmatpush2.xpose.msra.mxu0 0.0
    %693 = vmatprep.subr.mxu0 0.0
    %694 = vmatpush2.xpose.msra.mxu0 0.0
    %695 = vmatprep.subr.mxu0 0.0
    %696 = vmatpush2.xpose.msra.mxu0 0.0
    %697 = vmatprep.subr.mxu0 0.0
    %698 = vmatpush2.xpose.msra.mxu0 0.0
    %699 = vmatprep.subr.mxu0 0.0
    %700 = vmatpush2.xpose.msra.mxu0 0.0
    %701 = vmatprep.subr.mxu0 0.0
    %702 = vmatpush2.xpose.msra.mxu0 0.0
    %703 = vmatprep.subr.mxu0 0.0
    %704 = vmatpush2.xpose.msra.mxu0 0.0
    %705 = vmatprep.subr.mxu0 0.0
    %706 = vmatpush2.xpose.msra.mxu0 0.0
    %707 = vmatprep.mubr.f32.mxu0 0.0
    %708 = vmatmul.mubr.f32.gmra.mxu0 %v638
    %v709 = vpop.f32.mrf.mxu0
    %v710 = vadd.f32 0.0, %v709
    %v711 = vpop.f32.mrf.mxu0
    %712 = vdwg.mxu0
    %v714 = vsel %vm104, %v64, 0
    %v717 = vsel %vm104, %v80, 0
    %719 = vmatprep.subr.mxu0 0.0
    %720 = vmatpush1.xpose.msra.mxu0 0.0
    %721 = vmatprep.subr.mxu0 0.0
    %722 = vmatpush1.xpose.msra.mxu0 0.0
    %723 = vmatprep.subr.mxu0 0.0
    %724 = vmatpush1.xpose.msra.mxu0 0.0
    %725 = vmatprep.subr.mxu0 0.0
    %726 = vmatpush1.xpose.msra.mxu0 0.0
    %727 = vmatprep.subr.mxu0 0.0
    %728 = vmatpush1.xpose.msra.mxu0 0.0
    %729 = vmatprep.subr.mxu0 0.0
    %730 = vmatpush1.xpose.msra.mxu0 0.0
    %731 = vmatprep.subr.mxu0 0.0
    %732 = vmatpush1.xpose.msra.mxu0 0.0
    %733 = vmatprep.subr.mxu0 0.0
    %734 = vmatpush1.xpose.msra.mxu0 0.0
    %735 = vmatprep.subr.mxu0 0.0
    %736 = vmatpush1.xpose.msra.mxu0 0.0
    %737 = vmatprep.subr.mxu0 0.0
    %738 = vmatpush1.xpose.msra.mxu0 0.0
    %739 = vmatprep.subr.mxu0 0.0
    %740 = vmatpush1.xpose.msra.mxu0 0.0
    %741 = vmatprep.subr.mxu0 0.0
    %742 = vmatpush1.xpose.msra.mxu0 0.0
    %743 = vmatprep.subr.mxu0 0.0
    %744 = vmatpush1.xpose.msra.mxu0 0.0
    %745 = vmatprep.subr.mxu0 0.0
    %746 = vmatpush1.xpose.msra.mxu0 0.0
    %747 = vmatprep.subr.mxu0 0.0
    %748 = vmatpush1.xpose.msra.mxu0 0.0
    %749 = vmatprep.subr.mxu0 0.0
    %750 = vmatpush1.xpose.msra.mxu0 %v717
    %751 = vmatprep.subr.mxu0 0.0
    %752 = vmatpush2.xpose.msra.mxu0 0.0
    %753 = vmatprep.subr.mxu0 0.0
    %754 = vmatpush2.xpose.msra.mxu0 0.0
    %755 = vmatprep.subr.mxu0 0.0
    %756 = vmatpush2.xpose.msra.mxu0 0.0
    %757 = vmatprep.subr.mxu0 0.0
    %758 = vmatpush2.xpose.msra.mxu0 0.0
    %759 = vmatprep.subr.mxu0 0.0
    %760 = vmatpush2.xpose.msra.mxu0 0.0
    %761 = vmatprep.subr.mxu0 0.0
    %762 = vmatpush2.xpose.msra.mxu0 0.0
    %763 = vmatprep.subr.mxu0 0.0
    %764 = vmatpush2.xpose.msra.mxu0 0.0
    %765 = vmatprep.subr.mxu0 0.0
    %766 = vmatpush2.xpose.msra.mxu0 0.0
    %767 = vmatprep.subr.mxu0 0.0
    %768 = vmatpush2.xpose.msra.mxu0 0.0
    %769 = vmatprep.subr.mxu0 0.0
    %770 = vmatpush2.xpose.msra.mxu0 0.0
    %771 = vmatprep.subr.mxu0 0.0
    %772 = vmatpush2.xpose.msra.mxu0 0.0
    %773 = vmatprep.subr.mxu0 0.0
    %774 = vmatpush2.xpose.msra.mxu0 0.0
    %775 = vmatprep.subr.mxu0 0.0
    %776 = vmatpush2.xpose.msra.mxu0 0.0
    %777 = vmatprep.subr.mxu0 0.0
    %778 = vmatpush2.xpose.msra.mxu0 0.0
    %779 = vmatprep.subr.mxu0 0.0
    %780 = vmatpush2.xpose.msra.mxu0 0.0
    %781 = vmatprep.subr.mxu0 0.0
    %782 = vmatpush2.xpose.msra.mxu0 0.0
    %783 = vmatprep.mubr.f32.mxu0 0.0
    %784 = vmatmul.mubr.f32.gmra.mxu0 %v714
    %v785 = vpop.f32.mrf.mxu0
    %v786 = vadd.f32 0.0, %v785
    %v787 = vpop.f32.mrf.mxu0
    %788 = vdwg.mxu0
    %v790 = vsel %vm104, %v65, 0
    %v793 = vsel %vm104, %v81, 0
    %795 = vmatprep.subr.mxu0 0.0
    %796 = vmatpush1.xpose.msra.mxu0 0.0
    %797 = vmatprep.subr.mxu0 0.0
    %798 = vmatpush1.xpose.msra.mxu0 0.0
    %799 = vmatprep.subr.mxu0 0.0
    %800 = vmatpush1.xpose.msra.mxu0 0.0
    %801 = vmatprep.subr.mxu0 0.0
    %802 = vmatpush1.xpose.msra.mxu0 0.0
    %803 = vmatprep.subr.mxu0 0.0
    %804 = vmatpush1.xpose.msra.mxu0 0.0
    %805 = vmatprep.subr.mxu0 0.0
    %806 = vmatpush1.xpose.msra.mxu0 0.0
    %807 = vmatprep.subr.mxu0 0.0
    %808 = vmatpush1.xpose.msra.mxu0 0.0
    %809 = vmatprep.subr.mxu0 0.0
    %810 = vmatpush1.xpose.msra.mxu0 0.0
    %811 = vmatprep.subr.mxu0 0.0
    %812 = vmatpush1.xpose.msra.mxu0 0.0
    %813 = vmatprep.subr.mxu0 0.0
    %814 = vmatpush1.xpose.msra.mxu0 0.0
    %815 = vmatprep.subr.mxu0 0.0
    %816 = vmatpush1.xpose.msra.mxu0 0.0
    %817 = vmatprep.subr.mxu0 0.0
    %818 = vmatpush1.xpose.msra.mxu0 0.0
    %819 = vmatprep.subr.mxu0 0.0
    %820 = vmatpush1.xpose.msra.mxu0 0.0
    %821 = vmatprep.subr.mxu0 0.0
    %822 = vmatpush1.xpose.msra.mxu0 0.0
    %823 = vmatprep.subr.mxu0 0.0
    %824 = vmatpush1.xpose.msra.mxu0 0.0
    %825 = vmatprep.subr.mxu0 0.0
    %826 = vmatpush1.xpose.msra.mxu0 %v793
    %827 = vmatprep.subr.mxu0 0.0
    %828 = vmatpush2.xpose.msra.mxu0 0.0
    %829 = vmatprep.subr.mxu0 0.0
    %830 = vmatpush2.xpose.msra.mxu0 0.0
    %831 = vmatprep.subr.mxu0 0.0
    %832 = vmatpush2.xpose.msra.mxu0 0.0
    %833 = vmatprep.subr.mxu0 0.0
    %834 = vmatpush2.xpose.msra.mxu0 0.0
    %835 = vmatprep.subr.mxu0 0.0
    %836 = vmatpush2.xpose.msra.mxu0 0.0
    %837 = vmatprep.subr.mxu0 0.0
    %838 = vmatpush2.xpose.msra.mxu0 0.0
    %839 = vmatprep.subr.mxu0 0.0
    %840 = vmatpush2.xpose.msra.mxu0 0.0
    %841 = vmatprep.subr.mxu0 0.0
    %842 = vmatpush2.xpose.msra.mxu0 0.0
    %843 = vmatprep.subr.mxu0 0.0
    %844 = vmatpush2.xpose.msra.mxu0 0.0
    %845 = vmatprep.subr.mxu0 0.0
    %846 = vmatpush2.xpose.msra.mxu0 0.0
    %847 = vmatprep.subr.mxu0 0.0
    %848 = vmatpush2.xpose.msra.mxu0 0.0
    %849 = vmatprep.subr.mxu0 0.0
    %850 = vmatpush2.xpose.msra.mxu0 0.0
    %851 = vmatprep.subr.mxu0 0.0
    %852 = vmatpush2.xpose.msra.mxu0 0.0
    %853 = vmatprep.subr.mxu0 0.0
    %854 = vmatpush2.xpose.msra.mxu0 0.0
    %855 = vmatprep.subr.mxu0 0.0
    %856 = vmatpush2.xpose.msra.mxu0 0.0
    %857 = vmatprep.subr.mxu0 0.0
    %858 = vmatpush2.xpose.msra.mxu0 0.0
    %859 = vmatprep.mubr.f32.mxu0 0.0
    %860 = vmatmul.mubr.f32.gmra.mxu0 %v790
    %v861 = vpop.f32.mrf.mxu0
    %v862 = vadd.f32 0.0, %v861
    %v863 = vpop.f32.mrf.mxu0
    %864 = vdwg.mxu0
    %v866 = vsel %vm104, %v66, 0
    %v869 = vsel %vm104, %v82, 0
    %871 = vmatprep.subr.mxu0 0.0
    %872 = vmatpush1.xpose.msra.mxu0 0.0
    %873 = vmatprep.subr.mxu0 0.0
    %874 = vmatpush1.xpose.msra.mxu0 0.0
    %875 = vmatprep.subr.mxu0 0.0
    %876 = vmatpush1.xpose.msra.mxu0 0.0
    %877 = vmatprep.subr.mxu0 0.0
    %878 = vmatpush1.xpose.msra.mxu0 0.0
    %879 = vmatprep.subr.mxu0 0.0
    %880 = vmatpush1.xpose.msra.mxu0 0.0
    %881 = vmatprep.subr.mxu0 0.0
    %882 = vmatpush1.xpose.msra.mxu0 0.0
    %883 = vmatprep.subr.mxu0 0.0
    %884 = vmatpush1.xpose.msra.mxu0 0.0
    %885 = vmatprep.subr.mxu0 0.0
    %886 = vmatpush1.xpose.msra.mxu0 0.0
    %887 = vmatprep.subr.mxu0 0.0
    %888 = vmatpush1.xpose.msra.mxu0 0.0
    %889 = vmatprep.subr.mxu0 0.0
    %890 = vmatpush1.xpose.msra.mxu0 0.0
    %891 = vmatprep.subr.mxu0 0.0
    %892 = vmatpush1.xpose.msra.mxu0 0.0
    %893 = vmatprep.subr.mxu0 0.0
    %894 = vmatpush1.xpose.msra.mxu0 0.0
    %895 = vmatprep.subr.mxu0 0.0
    %896 = vmatpush1.xpose.msra.mxu0 0.0
    %897 = vmatprep.subr.mxu0 0.0
    %898 = vmatpush1.xpose.msra.mxu0 0.0
    %899 = vmatprep.subr.mxu0 0.0
    %900 = vmatpush1.xpose.msra.mxu0 0.0
    %901 = vmatprep.subr.mxu0 0.0
    %902 = vmatpush1.xpose.msra.mxu0 %v869
    %903 = vmatprep.subr.mxu0 0.0
    %904 = vmatpush2.xpose.msra.mxu0 0.0
    %905 = vmatprep.subr.mxu0 0.0
    %906 = vmatpush2.xpose.msra.mxu0 0.0
    %907 = vmatprep.subr.mxu0 0.0
    %908 = vmatpush2.xpose.msra.mxu0 0.0
    %909 = vmatprep.subr.mxu0 0.0
    %910 = vmatpush2.xpose.msra.mxu0 0.0
    %911 = vmatprep.subr.mxu0 0.0
    %912 = vmatpush2.xpose.msra.mxu0 0.0
    %913 = vmatprep.subr.mxu0 0.0
    %914 = vmatpush2.xpose.msra.mxu0 0.0
    %915 = vmatprep.subr.mxu0 0.0
    %916 = vmatpush2.xpose.msra.mxu0 0.0
    %917 = vmatprep.subr.mxu0 0.0
    %918 = vmatpush2.xpose.msra.mxu0 0.0
    %919 = vmatprep.subr.mxu0 0.0
    %920 = vmatpush2.xpose.msra.mxu0 0.0
    %921 = vmatprep.subr.mxu0 0.0
    %922 = vmatpush2.xpose.msra.mxu0 0.0
    %923 = vmatprep.subr.mxu0 0.0
    %924 = vmatpush2.xpose.msra.mxu0 0.0
    %925 = vmatprep.subr.mxu0 0.0
    %926 = vmatpush2.xpose.msra.mxu0 0.0
    %927 = vmatprep.subr.mxu0 0.0
    %928 = vmatpush2.xpose.msra.mxu0 0.0
    %929 = vmatprep.subr.mxu0 0.0
    %930 = vmatpush2.xpose.msra.mxu0 0.0
    %931 = vmatprep.subr.mxu0 0.0
    %932 = vmatpush2.xpose.msra.mxu0 0.0
    %933 = vmatprep.subr.mxu0 0.0
    %934 = vmatpush2.xpose.msra.mxu0 0.0
    %935 = vmatprep.mubr.f32.mxu0 0.0
    %936 = vmatmul.mubr.f32.gmra.mxu0 %v866
    %v937 = vpop.f32.mrf.mxu0
    %v938 = vadd.f32 0.0, %v937
    %v939 = vpop.f32.mrf.mxu0
    %940 = vdwg.mxu0
    %v942 = vsel %vm104, %v67, 0
    %v945 = vsel %vm104, %v83, 0
    %947 = vmatprep.subr.mxu0 0.0
    %948 = vmatpush1.xpose.msra.mxu0 0.0
    %949 = vmatprep.subr.mxu0 0.0
    %950 = vmatpush1.xpose.msra.mxu0 0.0
    %951 = vmatprep.subr.mxu0 0.0
    %952 = vmatpush1.xpose.msra.mxu0 0.0
    %953 = vmatprep.subr.mxu0 0.0
    %954 = vmatpush1.xpose.msra.mxu0 0.0
    %955 = vmatprep.subr.mxu0 0.0
    %956 = vmatpush1.xpose.msra.mxu0 0.0
    %957 = vmatprep.subr.mxu0 0.0
    %958 = vmatpush1.xpose.msra.mxu0 0.0
    %959 = vmatprep.subr.mxu0 0.0
    %960 = vmatpush1.xpose.msra.mxu0 0.0
    %961 = vmatprep.subr.mxu0 0.0
    %962 = vmatpush1.xpose.msra.mxu0 0.0
    %963 = vmatprep.subr.mxu0 0.0
    %964 = vmatpush1.xpose.msra.mxu0 0.0
    %965 = vmatprep.subr.mxu0 0.0
    %966 = vmatpush1.xpose.msra.mxu0 0.0
    %967 = vmatprep.subr.mxu0 0.0
    %968 = vmatpush1.xpose.msra.mxu0 0.0
    %969 = vmatprep.subr.mxu0 0.0
    %970 = vmatpush1.xpose.msra.mxu0 0.0
    %971 = vmatprep.subr.mxu0 0.0
    %972 = vmatpush1.xpose.msra.mxu0 0.0
    %973 = vmatprep.subr.mxu0 0.0
    %974 = vmatpush1.xpose.msra.mxu0 0.0
    %975 = vmatprep.subr.mxu0 0.0
    %976 = vmatpush1.xpose.msra.mxu0 0.0
    %977 = vmatprep.subr.mxu0 0.0
    %978 = vmatpush1.xpose.msra.mxu0 %v945
    %979 = vmatprep.subr.mxu0 0.0
    %980 = vmatpush2.xpose.msra.mxu0 0.0
    %981 = vmatprep.subr.mxu0 0.0
    %982 = vmatpush2.xpose.msra.mxu0 0.0
    %983 = vmatprep.subr.mxu0 0.0
    %984 = vmatpush2.xpose.msra.mxu0 0.0
    %985 = vmatprep.subr.mxu0 0.0
    %986 = vmatpush2.xpose.msra.mxu0 0.0
    %987 = vmatprep.subr.mxu0 0.0
    %988 = vmatpush2.xpose.msra.mxu0 0.0
    %989 = vmatprep.subr.mxu0 0.0
    %990 = vmatpush2.xpose.msra.mxu0 0.0
    %991 = vmatprep.subr.mxu0 0.0
    %992 = vmatpush2.xpose.msra.mxu0 0.0
    %993 = vmatprep.subr.mxu0 0.0
    %994 = vmatpush2.xpose.msra.mxu0 0.0
    %995 = vmatprep.subr.mxu0 0.0
    %996 = vmatpush2.xpose.msra.mxu0 0.0
    %997 = vmatprep.subr.mxu0 0.0
    %998 = vmatpush2.xpose.msra.mxu0 0.0
    %999 = vmatprep.subr.mxu0 0.0
    %1000 = vmatpush2.xpose.msra.mxu0 0.0
    %1001 = vmatprep.subr.mxu0 0.0
    %1002 = vmatpush2.xpose.msra.mxu0 0.0
    %1003 = vmatprep.subr.mxu0 0.0
    %1004 = vmatpush2.xpose.msra.mxu0 0.0
    %1005 = vmatprep.subr.mxu0 0.0
    %1006 = vmatpush2.xpose.msra.mxu0 0.0
    %1007 = vmatprep.subr.mxu0 0.0
    %1008 = vmatpush2.xpose.msra.mxu0 0.0
    %1009 = vmatprep.subr.mxu0 0.0
    %1010 = vmatpush2.xpose.msra.mxu0 0.0
    %1011 = vmatprep.mubr.f32.mxu0 0.0
    %1012 = vmatmul.mubr.f32.gmra.mxu0 %v942
    %v1013 = vpop.f32.mrf.mxu0
    %v1014 = vadd.f32 0.0, %v1013
    %v1015 = vpop.f32.mrf.mxu0
    %1016 = vdwg.mxu0
    %v1018 = vsel %vm104, %v68, 0
    %v1021 = vsel %vm104, %v84, 0
    %1023 = vmatprep.subr.mxu0 0.0
    %1024 = vmatpush1.xpose.msra.mxu0 0.0
    %1025 = vmatprep.subr.mxu0 0.0
    %1026 = vmatpush1.xpose.msra.mxu0 0.0
    %1027 = vmatprep.subr.mxu0 0.0
    %1028 = vmatpush1.xpose.msra.mxu0 0.0
    %1029 = vmatprep.subr.mxu0 0.0
    %1030 = vmatpush1.xpose.msra.mxu0 0.0
    %1031 = vmatprep.subr.mxu0 0.0
    %1032 = vmatpush1.xpose.msra.mxu0 0.0
    %1033 = vmatprep.subr.mxu0 0.0
    %1034 = vmatpush1.xpose.msra.mxu0 0.0
    %1035 = vmatprep.subr.mxu0 0.0
    %1036 = vmatpush1.xpose.msra.mxu0 0.0
    %1037 = vmatprep.subr.mxu0 0.0
    %1038 = vmatpush1.xpose.msra.mxu0 0.0
    %1039 = vmatprep.subr.mxu0 0.0
    %1040 = vmatpush1.xpose.msra.mxu0 0.0
    %1041 = vmatprep.subr.mxu0 0.0
    %1042 = vmatpush1.xpose.msra.mxu0 0.0
    %1043 = vmatprep.subr.mxu0 0.0
    %1044 = vmatpush1.xpose.msra.mxu0 0.0
    %1045 = vmatprep.subr.mxu0 0.0
    %1046 = vmatpush1.xpose.msra.mxu0 0.0
    %1047 = vmatprep.subr.mxu0 0.0
    %1048 = vmatpush1.xpose.msra.mxu0 0.0
    %1049 = vmatprep.subr.mxu0 0.0
    %1050 = vmatpush1.xpose.msra.mxu0 0.0
    %1051 = vmatprep.subr.mxu0 0.0
    %1052 = vmatpush1.xpose.msra.mxu0 0.0
    %1053 = vmatprep.subr.mxu0 0.0
    %1054 = vmatpush1.xpose.msra.mxu0 %v1021
    %1055 = vmatprep.subr.mxu0 0.0
    %1056 = vmatpush2.xpose.msra.mxu0 0.0
    %1057 = vmatprep.subr.mxu0 0.0
    %1058 = vmatpush2.xpose.msra.mxu0 0.0
    %1059 = vmatprep.subr.mxu0 0.0
    %1060 = vmatpush2.xpose.msra.mxu0 0.0
    %1061 = vmatprep.subr.mxu0 0.0
    %1062 = vmatpush2.xpose.msra.mxu0 0.0
    %1063 = vmatprep.subr.mxu0 0.0
    %1064 = vmatpush2.xpose.msra.mxu0 0.0
    %1065 = vmatprep.subr.mxu0 0.0
    %1066 = vmatpush2.xpose.msra.mxu0 0.0
    %1067 = vmatprep.subr.mxu0 0.0
    %1068 = vmatpush2.xpose.msra.mxu0 0.0
    %1069 = vmatprep.subr.mxu0 0.0
    %1070 = vmatpush2.xpose.msra.mxu0 0.0
    %1071 = vmatprep.subr.mxu0 0.0
    %1072 = vmatpush2.xpose.msra.mxu0 0.0
    %1073 = vmatprep.subr.mxu0 0.0
    %1074 = vmatpush2.xpose.msra.mxu0 0.0
    %1075 = vmatprep.subr.mxu0 0.0
    %1076 = vmatpush2.xpose.msra.mxu0 0.0
    %1077 = vmatprep.subr.mxu0 0.0
    %1078 = vmatpush2.xpose.msra.mxu0 0.0
    %1079 = vmatprep.subr.mxu0 0.0
    %1080 = vmatpush2.xpose.msra.mxu0 0.0
    %1081 = vmatprep.subr.mxu0 0.0
    %1082 = vmatpush2.xpose.msra.mxu0 0.0
    %1083 = vmatprep.subr.mxu0 0.0
    %1084 = vmatpush2.xpose.msra.mxu0 0.0
    %1085 = vmatprep.subr.mxu0 0.0
    %1086 = vmatpush2.xpose.msra.mxu0 0.0
    %1087 = vmatprep.mubr.f32.mxu0 0.0
    %1088 = vmatmul.mubr.f32.gmra.mxu0 %v1018
    %v1089 = vpop.f32.mrf.mxu0
    %v1090 = vadd.f32 0.0, %v1089
    %v1091 = vpop.f32.mrf.mxu0
    %1092 = vdwg.mxu0
    %v1094 = vsel %vm104, %v69, 0
    %v1097 = vsel %vm104, %v85, 0
    %1099 = vmatprep.subr.mxu0 0.0
    %1100 = vmatpush1.xpose.msra.mxu0 0.0
    %1101 = vmatprep.subr.mxu0 0.0
    %1102 = vmatpush1.xpose.msra.mxu0 0.0
    %1103 = vmatprep.subr.mxu0 0.0
    %1104 = vmatpush1.xpose.msra.mxu0 0.0
    %1105 = vmatprep.subr.mxu0 0.0
    %1106 = vmatpush1.xpose.msra.mxu0 0.0
    %1107 = vmatprep.subr.mxu0 0.0
    %1108 = vmatpush1.xpose.msra.mxu0 0.0
    %1109 = vmatprep.subr.mxu0 0.0
    %1110 = vmatpush1.xpose.msra.mxu0 0.0
    %1111 = vmatprep.subr.mxu0 0.0
    %1112 = vmatpush1.xpose.msra.mxu0 0.0
    %1113 = vmatprep.subr.mxu0 0.0
    %1114 = vmatpush1.xpose.msra.mxu0 0.0
    %1115 = vmatprep.subr.mxu0 0.0
    %1116 = vmatpush1.xpose.msra.mxu0 0.0
    %1117 = vmatprep.subr.mxu0 0.0
    %1118 = vmatpush1.xpose.msra.mxu0 0.0
    %1119 = vmatprep.subr.mxu0 0.0
    %1120 = vmatpush1.xpose.msra.mxu0 0.0
    %1121 = vmatprep.subr.mxu0 0.0
    %1122 = vmatpush1.xpose.msra.mxu0 0.0
    %1123 = vmatprep.subr.mxu0 0.0
    %1124 = vmatpush1.xpose.msra.mxu0 0.0
    %1125 = vmatprep.subr.mxu0 0.0
    %1126 = vmatpush1.xpose.msra.mxu0 0.0
    %1127 = vmatprep.subr.mxu0 0.0
    %1128 = vmatpush1.xpose.msra.mxu0 0.0
    %1129 = vmatprep.subr.mxu0 0.0
    %1130 = vmatpush1.xpose.msra.mxu0 %v1097
    %1131 = vmatprep.subr.mxu0 0.0
    %1132 = vmatpush2.xpose.msra.mxu0 0.0
    %1133 = vmatprep.subr.mxu0 0.0
    %1134 = vmatpush2.xpose.msra.mxu0 0.0
    %1135 = vmatprep.subr.mxu0 0.0
    %1136 = vmatpush2.xpose.msra.mxu0 0.0
    %1137 = vmatprep.subr.mxu0 0.0
    %1138 = vmatpush2.xpose.msra.mxu0 0.0
    %1139 = vmatprep.subr.mxu0 0.0
    %1140 = vmatpush2.xpose.msra.mxu0 0.0
    %1141 = vmatprep.subr.mxu0 0.0
    %1142 = vmatpush2.xpose.msra.mxu0 0.0
    %1143 = vmatprep.subr.mxu0 0.0
    %1144 = vmatpush2.xpose.msra.mxu0 0.0
    %1145 = vmatprep.subr.mxu0 0.0
    %1146 = vmatpush2.xpose.msra.mxu0 0.0
    %1147 = vmatprep.subr.mxu0 0.0
    %1148 = vmatpush2.xpose.msra.mxu0 0.0
    %1149 = vmatprep.subr.mxu0 0.0
    %1150 = vmatpush2.xpose.msra.mxu0 0.0
    %1151 = vmatprep.subr.mxu0 0.0
    %1152 = vmatpush2.xpose.msra.mxu0 0.0
    %1153 = vmatprep.subr.mxu0 0.0
    %1154 = vmatpush2.xpose.msra.mxu0 0.0
    %1155 = vmatprep.subr.mxu0 0.0
    %1156 = vmatpush2.xpose.msra.mxu0 0.0
    %1157 = vmatprep.subr.mxu0 0.0
    %1158 = vmatpush2.xpose.msra.mxu0 0.0
    %1159 = vmatprep.subr.mxu0 0.0
    %1160 = vmatpush2.xpose.msra.mxu0 0.0
    %1161 = vmatprep.subr.mxu0 0.0
    %1162 = vmatpush2.xpose.msra.mxu0 0.0
    %1163 = vmatprep.mubr.f32.mxu0 0.0
    %1164 = vmatmul.mubr.f32.gmra.mxu0 %v1094
    %v1165 = vpop.f32.mrf.mxu0
    %v1166 = vadd.f32 0.0, %v1165
    %v1167 = vpop.f32.mrf.mxu0
    %1168 = vdwg.mxu0
    %v1170 = vsel %vm104, %v70, 0
    %v1173 = vsel %vm104, %v86, 0
    %1175 = vmatprep.subr.mxu0 0.0
    %1176 = vmatpush1.xpose.msra.mxu0 0.0
    %1177 = vmatprep.subr.mxu0 0.0
    %1178 = vmatpush1.xpose.msra.mxu0 0.0
    %1179 = vmatprep.subr.mxu0 0.0
    %1180 = vmatpush1.xpose.msra.mxu0 0.0
    %1181 = vmatprep.subr.mxu0 0.0
    %1182 = vmatpush1.xpose.msra.mxu0 0.0
    %1183 = vmatprep.subr.mxu0 0.0
    %1184 = vmatpush1.xpose.msra.mxu0 0.0
    %1185 = vmatprep.subr.mxu0 0.0
    %1186 = vmatpush1.xpose.msra.mxu0 0.0
    %1187 = vmatprep.subr.mxu0 0.0
    %1188 = vmatpush1.xpose.msra.mxu0 0.0
    %1189 = vmatprep.subr.mxu0 0.0
    %1190 = vmatpush1.xpose.msra.mxu0 0.0
    %1191 = vmatprep.subr.mxu0 0.0
    %1192 = vmatpush1.xpose.msra.mxu0 0.0
    %1193 = vmatprep.subr.mxu0 0.0
    %1194 = vmatpush1.xpose.msra.mxu0 0.0
    %1195 = vmatprep.subr.mxu0 0.0
    %1196 = vmatpush1.xpose.msra.mxu0 0.0
    %1197 = vmatprep.subr.mxu0 0.0
    %1198 = vmatpush1.xpose.msra.mxu0 0.0
    %1199 = vmatprep.subr.mxu0 0.0
    %1200 = vmatpush1.xpose.msra.mxu0 0.0
    %1201 = vmatprep.subr.mxu0 0.0
    %1202 = vmatpush1.xpose.msra.mxu0 0.0
    %1203 = vmatprep.subr.mxu0 0.0
    %1204 = vmatpush1.xpose.msra.mxu0 0.0
    %1205 = vmatprep.subr.mxu0 0.0
    %1206 = vmatpush1.xpose.msra.mxu0 %v1173
    %1207 = vmatprep.subr.mxu0 0.0
    %1208 = vmatpush2.xpose.msra.mxu0 0.0
    %1209 = vmatprep.subr.mxu0 0.0
    %1210 = vmatpush2.xpose.msra.mxu0 0.0
    %1211 = vmatprep.subr.mxu0 0.0
    %1212 = vmatpush2.xpose.msra.mxu0 0.0
    %1213 = vmatprep.subr.mxu0 0.0
    %1214 = vmatpush2.xpose.msra.mxu0 0.0
    %1215 = vmatprep.subr.mxu0 0.0
    %1216 = vmatpush2.xpose.msra.mxu0 0.0
    %1217 = vmatprep.subr.mxu0 0.0
    %1218 = vmatpush2.xpose.msra.mxu0 0.0
    %1219 = vmatprep.subr.mxu0 0.0
    %1220 = vmatpush2.xpose.msra.mxu0 0.0
    %1221 = vmatprep.subr.mxu0 0.0
    %1222 = vmatpush2.xpose.msra.mxu0 0.0
    %1223 = vmatprep.subr.mxu0 0.0
    %1224 = vmatpush2.xpose.msra.mxu0 0.0
    %1225 = vmatprep.subr.mxu0 0.0
    %1226 = vmatpush2.xpose.msra.mxu0 0.0
    %1227 = vmatprep.subr.mxu0 0.0
    %1228 = vmatpush2.xpose.msra.mxu0 0.0
    %1229 = vmatprep.subr.mxu0 0.0
    %1230 = vmatpush2.xpose.msra.mxu0 0.0
    %1231 = vmatprep.subr.mxu0 0.0
    %1232 = vmatpush2.xpose.msra.mxu0 0.0
    %1233 = vmatprep.subr.mxu0 0.0
    %1234 = vmatpush2.xpose.msra.mxu0 0.0
    %1235 = vmatprep.subr.mxu0 0.0
    %1236 = vmatpush2.xpose.msra.mxu0 0.0
    %1237 = vmatprep.subr.mxu0 0.0
    %1238 = vmatpush2.xpose.msra.mxu0 0.0
    %1239 = vmatprep.mubr.f32.mxu0 0.0
    %1240 = vmatmul.mubr.f32.gmra.mxu0 %v1170
    %v1241 = vpop.f32.mrf.mxu0
    %v1242 = vadd.f32 0.0, %v1241
    %v1243 = vpop.f32.mrf.mxu0
    %1244 = vdwg.mxu0
    %v1246 = vsel %vm104, %v71, 0
    %v1249 = vsel %vm104, %v87, 0
    %1251 = vmatprep.subr.mxu0 0.0
    %1252 = vmatpush1.xpose.msra.mxu0 0.0
    %1253 = vmatprep.subr.mxu0 0.0
    %1254 = vmatpush1.xpose.msra.mxu0 0.0
    %1255 = vmatprep.subr.mxu0 0.0
    %1256 = vmatpush1.xpose.msra.mxu0 0.0
    %1257 = vmatprep.subr.mxu0 0.0
    %1258 = vmatpush1.xpose.msra.mxu0 0.0
    %1259 = vmatprep.subr.mxu0 0.0
    %1260 = vmatpush1.xpose.msra.mxu0 0.0
    %1261 = vmatprep.subr.mxu0 0.0
    %1262 = vmatpush1.xpose.msra.mxu0 0.0
    %1263 = vmatprep.subr.mxu0 0.0
    %1264 = vmatpush1.xpose.msra.mxu0 0.0
    %1265 = vmatprep.subr.mxu0 0.0
    %1266 = vmatpush1.xpose.msra.mxu0 0.0
    %1267 = vmatprep.subr.mxu0 0.0
    %1268 = vmatpush1.xpose.msra.mxu0 0.0
    %1269 = vmatprep.subr.mxu0 0.0
    %1270 = vmatpush1.xpose.msra.mxu0 0.0
    %1271 = vmatprep.subr.mxu0 0.0
    %1272 = vmatpush1.xpose.msra.mxu0 0.0
    %1273 = vmatprep.subr.mxu0 0.0
    %1274 = vmatpush1.xpose.msra.mxu0 0.0
    %1275 = vmatprep.subr.mxu0 0.0
    %1276 = vmatpush1.xpose.msra.mxu0 0.0
    %1277 = vmatprep.subr.mxu0 0.0
    %1278 = vmatpush1.xpose.msra.mxu0 0.0
    %1279 = vmatprep.subr.mxu0 0.0
    %1280 = vmatpush1.xpose.msra.mxu0 0.0
    %1281 = vmatprep.subr.mxu0 0.0
    %1282 = vmatpush1.xpose.msra.mxu0 %v1249
    %1283 = vmatprep.subr.mxu0 0.0
    %1284 = vmatpush2.xpose.msra.mxu0 0.0
    %1285 = vmatprep.subr.mxu0 0.0
    %1286 = vmatpush2.xpose.msra.mxu0 0.0
    %1287 = vmatprep.subr.mxu0 0.0
    %1288 = vmatpush2.xpose.msra.mxu0 0.0
    %1289 = vmatprep.subr.mxu0 0.0
    %1290 = vmatpush2.xpose.msra.mxu0 0.0
    %1291 = vmatprep.subr.mxu0 0.0
    %1292 = vmatpush2.xpose.msra.mxu0 0.0
    %1293 = vmatprep.subr.mxu0 0.0
    %1294 = vmatpush2.xpose.msra.mxu0 0.0
    %1295 = vmatprep.subr.mxu0 0.0
    %1296 = vmatpush2.xpose.msra.mxu0 0.0
    %1297 = vmatprep.subr.mxu0 0.0
    %1298 = vmatpush2.xpose.msra.mxu0 0.0
    %1299 = vmatprep.subr.mxu0 0.0
    %1300 = vmatpush2.xpose.msra.mxu0 0.0
    %1301 = vmatprep.subr.mxu0 0.0
    %1302 = vmatpush2.xpose.msra.mxu0 0.0
    %1303 = vmatprep.subr.mxu0 0.0
    %1304 = vmatpush2.xpose.msra.mxu0 0.0
    %1305 = vmatprep.subr.mxu0 0.0
    %1306 = vmatpush2.xpose.msra.mxu0 0.0
    %1307 = vmatprep.subr.mxu0 0.0
    %1308 = vmatpush2.xpose.msra.mxu0 0.0
    %1309 = vmatprep.subr.mxu0 0.0
    %1310 = vmatpush2.xpose.msra.mxu0 0.0
    %1311 = vmatprep.subr.mxu0 0.0
    %1312 = vmatpush2.xpose.msra.mxu0 0.0
    %1313 = vmatprep.subr.mxu0 0.0
    %1314 = vmatpush2.xpose.msra.mxu0 0.0
    %1315 = vmatprep.mubr.f32.mxu0 0.0
    %1316 = vmatmul.mubr.f32.gmra.mxu0 %v1246
    %v1317 = vpop.f32.mrf.mxu0
    %v1318 = vadd.f32 0.0, %v1317
    %v1319 = vpop.f32.mrf.mxu0
    %1320 = vdwg.mxu0
    %v1321 = vmul.f32 %v178, 0.17677669
    %v1322 = vmul.f32 %v254, 0.17677669
    %v1323 = vmul.f32 %v330, 0.17677669
    %v1324 = vmul.f32 %v406, 0.17677669
    %v1325 = vmul.f32 %v482, 0.17677669
    %v1326 = vmul.f32 %v558, 0.17677669
    %v1327 = vmul.f32 %v634, 0.17677669
    %v1328 = vmul.f32 %v710, 0.17677669
    %v1329 = vmul.f32 %v786, 0.17677669
    %v1330 = vmul.f32 %v862, 0.17677669
    %v1331 = vmul.f32 %v938, 0.17677669
    %v1332 = vmul.f32 %v1014, 0.17677669
    %v1333 = vmul.f32 %v1090, 0.17677669
    %v1334 = vmul.f32 %v1166, 0.17677669
    %v1335 = vmul.f32 %v1242, 0.17677669
    %v1336 = vmul.f32 %v1318, 0.17677669
    %vm1337 = vcmask 64512
    %v1338 = vsel %vm1337, %v1321, -inf
    %1339 = vmax.xlane.f32.xlu0 %v1338
    %v1340 = vpop.xlane.xlu0 %1339
    %v1341 = vsel %vm1337, %v1322, -inf
    %1342 = vmax.xlane.f32.xlu0 %v1341
    %v1343 = vpop.xlane.xlu0 %1342
    %v1344 = vsel %vm1337, %v1323, -inf
    %1345 = vmax.xlane.f32.xlu0 %v1344
    %v1346 = vpop.xlane.xlu0 %1345
    %v1347 = vsel %vm1337, %v1324, -inf
    %1348 = vmax.xlane.f32.xlu0 %v1347
    %v1349 = vpop.xlane.xlu0 %1348
    %v1350 = vsel %vm1337, %v1325, -inf
    %1351 = vmax.xlane.f32.xlu0 %v1350
    %v1352 = vpop.xlane.xlu0 %1351
    %v1353 = vsel %vm1337, %v1326, -inf
    %1354 = vmax.xlane.f32.xlu0 %v1353
    %v1355 = vpop.xlane.xlu0 %1354
    %v1356 = vsel %vm1337, %v1327, -inf
    %1357 = vmax.xlane.f32.xlu0 %v1356
    %v1358 = vpop.xlane.xlu0 %1357
    %v1359 = vsel %vm1337, %v1328, -inf
    %1360 = vmax.xlane.f32.xlu0 %v1359
    %v1361 = vpop.xlane.xlu0 %1360
    %v1362 = vsel %vm1337, %v1329, -inf
    %1363 = vmax.xlane.f32.xlu0 %v1362
    %v1364 = vpop.xlane.xlu0 %1363
    %v1365 = vsel %vm1337, %v1330, -inf
    %1366 = vmax.xlane.f32.xlu0 %v1365
    %v1367 = vpop.xlane.xlu0 %1366
    %v1368 = vsel %vm1337, %v1331, -inf
    %1369 = vmax.xlane.f32.xlu0 %v1368
    %v1370 = vpop.xlane.xlu0 %1369
    %v1371 = vsel %vm1337, %v1332, -inf
    %1372 = vmax.xlane.f32.xlu0 %v1371
    %v1373 = vpop.xlane.xlu0 %1372
    %v1374 = vsel %vm1337, %v1333, -inf
    %1375 = vmax.xlane.f32.xlu0 %v1374
    %v1376 = vpop.xlane.xlu0 %1375
    %v1377 = vsel %vm1337, %v1334, -inf
    %1378 = vmax.xlane.f32.xlu0 %v1377
    %v1379 = vpop.xlane.xlu0 %1378
    %v1380 = vsel %vm1337, %v1335, -inf
    %1381 = vmax.xlane.f32.xlu0 %v1380
    %v1382 = vpop.xlane.xlu0 %1381
    %v1383 = vsel %vm1337, %v1336, -inf
    %1384 = vmax.xlane.f32.xlu0 %v1383
    %v1385 = vpop.xlane.xlu0 %1384
    %v1386 = vsub.f32 %v1321, %v1340
    %v1387 = vsub.f32 %v1322, %v1343
    %v1388 = vsub.f32 %v1323, %v1346
    %v1389 = vsub.f32 %v1324, %v1349
    %v1390 = vsub.f32 %v1325, %v1352
    %v1391 = vsub.f32 %v1326, %v1355
    %v1392 = vsub.f32 %v1327, %v1358
    %v1393 = vsub.f32 %v1328, %v1361
    %v1394 = vsub.f32 %v1329, %v1364
    %v1395 = vsub.f32 %v1330, %v1367
    %v1396 = vsub.f32 %v1331, %v1370
    %v1397 = vsub.f32 %v1332, %v1373
    %v1398 = vsub.f32 %v1333, %v1376
    %v1399 = vsub.f32 %v1334, %v1379
    %v1400 = vsub.f32 %v1335, %v1382
    %v1401 = vsub.f32 %v1336, %v1385
    %v1402 = vmul.f32 %v1386, 1.442695
    %v1403 = vpow.pop %v1402
    %v1404 = vmul.f32 %v1387, 1.442695
    %v1405 = vpow.pop %v1404
    %v1406 = vmul.f32 %v1388, 1.442695
    %v1407 = vpow.pop %v1406
    %v1408 = vmul.f32 %v1389, 1.442695
    %v1409 = vpow.pop %v1408
    %v1410 = vmul.f32 %v1390, 1.442695
    %v1411 = vpow.pop %v1410
    %v1412 = vmul.f32 %v1391, 1.442695
    %v1413 = vpow.pop %v1412
    %v1414 = vmul.f32 %v1392, 1.442695
    %v1415 = vpow.pop %v1414
    %v1416 = vmul.f32 %v1393, 1.442695
    %v1417 = vpow.pop %v1416
    %v1418 = vmul.f32 %v1394, 1.442695
    %v1419 = vpow.pop %v1418
    %v1420 = vmul.f32 %v1395, 1.442695
    %v1421 = vpow.pop %v1420
    %v1422 = vmul.f32 %v1396, 1.442695
    %v1423 = vpow.pop %v1422
    %v1424 = vmul.f32 %v1397, 1.442695
    %v1425 = vpow.pop %v1424
    %v1426 = vmul.f32 %v1398, 1.442695
    %v1427 = vpow.pop %v1426
    %v1428 = vmul.f32 %v1399, 1.442695
    %v1429 = vpow.pop %v1428
    %v1430 = vmul.f32 %v1400, 1.442695
    %v1431 = vpow.pop %v1430
    %v1432 = vmul.f32 %v1401, 1.442695
    %v1433 = vpow.pop %v1432
    %v1434 = vsel %vm1337, %v1403, 0.0
    %1435 = vadd.xlane.f32.xlu0 %v1434
    %v1436 = vpop.xlane.xlu0 %1435
    %v1437 = vsel %vm1337, %v1405, 0.0
    %1438 = vadd.xlane.f32.xlu0 %v1437
    %v1439 = vpop.xlane.xlu0 %1438
    %v1440 = vsel %vm1337, %v1407, 0.0
    %1441 = vadd.xlane.f32.xlu0 %v1440
    %v1442 = vpop.xlane.xlu0 %1441
    %v1443 = vsel %vm1337, %v1409, 0.0
    %1444 = vadd.xlane.f32.xlu0 %v1443
    %v1445 = vpop.xlane.xlu0 %1444
    %v1446 = vsel %vm1337, %v1411, 0.0
    %1447 = vadd.xlane.f32.xlu0 %v1446
    %v1448 = vpop.xlane.xlu0 %1447
    %v1449 = vsel %vm1337, %v1413, 0.0
    %1450 = vadd.xlane.f32.xlu0 %v1449
    %v1451 = vpop.xlane.xlu0 %1450
    %v1452 = vsel %vm1337, %v1415, 0.0
    %1453 = vadd.xlane.f32.xlu0 %v1452
    %v1454 = vpop.xlane.xlu0 %1453
    %v1455 = vsel %vm1337, %v1417, 0.0
    %1456 = vadd.xlane.f32.xlu0 %v1455
    %v1457 = vpop.xlane.xlu0 %1456
    %v1458 = vsel %vm1337, %v1419, 0.0
    %1459 = vadd.xlane.f32.xlu0 %v1458
    %v1460 = vpop.xlane.xlu0 %1459
    %v1461 = vsel %vm1337, %v1421, 0.0
    %1462 = vadd.xlane.f32.xlu0 %v1461
    %v1463 = vpop.xlane.xlu0 %1462
    %v1464 = vsel %vm1337, %v1423, 0.0
    %1465 = vadd.xlane.f32.xlu0 %v1464
    %v1466 = vpop.xlane.xlu0 %1465
    %v1467 = vsel %vm1337, %v1425, 0.0
    %1468 = vadd.xlane.f32.xlu0 %v1467
    %v1469 = vpop.xlane.xlu0 %1468
    %v1470 = vsel %vm1337, %v1427, 0.0
    %1471 = vadd.xlane.f32.xlu0 %v1470
    %v1472 = vpop.xlane.xlu0 %1471
    %v1473 = vsel %vm1337, %v1429, 0.0
    %1474 = vadd.xlane.f32.xlu0 %v1473
    %v1475 = vpop.xlane.xlu0 %1474
    %v1476 = vsel %vm1337, %v1431, 0.0
    %1477 = vadd.xlane.f32.xlu0 %v1476
    %v1478 = vpop.xlane.xlu0 %1477
    %v1479 = vsel %vm1337, %v1433, 0.0
    %1480 = vadd.xlane.f32.xlu0 %v1479
    %v1481 = vpop.xlane.xlu0 %1480
    %v1482 = vrcp.pop %v1436
    %v1483 = vrcp.pop %v1439
    %v1484 = vrcp.pop %v1442
    %v1485 = vrcp.pop %v1445
    %v1486 = vrcp.pop %v1448
    %v1487 = vrcp.pop %v1451
    %v1488 = vrcp.pop %v1454
    %v1489 = vrcp.pop %v1457
    %v1490 = vrcp.pop %v1460
    %v1491 = vrcp.pop %v1463
    %v1492 = vrcp.pop %v1466
    %v1493 = vrcp.pop %v1469
    %v1494 = vrcp.pop %v1472
    %v1495 = vrcp.pop %v1475
    %v1496 = vrcp.pop %v1478
    %v1497 = vrcp.pop %v1481
    %v1498 = vmul.f32 %v1403, %v1482
    %v1499 = vmul.f32 %v1405, %v1483
    %v1500 = vmul.f32 %v1407, %v1484
    %v1501 = vmul.f32 %v1409, %v1485
    %v1502 = vmul.f32 %v1411, %v1486
    %v1503 = vmul.f32 %v1413, %v1487
    %v1504 = vmul.f32 %v1415, %v1488
    %v1505 = vmul.f32 %v1417, %v1489
    %v1506 = vmul.f32 %v1419, %v1490
    %v1507 = vmul.f32 %v1421, %v1491
    %v1508 = vmul.f32 %v1423, %v1492
    %v1509 = vmul.f32 %v1425, %v1493
    %v1510 = vmul.f32 %v1427, %v1494
    %v1511 = vmul.f32 %v1429, %v1495
    %v1512 = vmul.f32 %v1431, %v1496
    %v1513 = vmul.f32 %v1433, %v1497
    %v1515 = vsel %vm1337, %v1498, 0
    %1517 = vmatprep.subr.mxu0 0.0
    %1518 = vmatpush1.msra.mxu0 0.0
    %1519 = vmatprep.subr.mxu0 0.0
    %1520 = vmatpush1.msra.mxu0 0.0
    %1521 = vmatprep.subr.mxu0 0.0
    %1522 = vmatpush1.msra.mxu0 0.0
    %1523 = vmatprep.subr.mxu0 0.0
    %1524 = vmatpush1.msra.mxu0 0.0
    %1525 = vmatprep.subr.mxu0 0.0
    %1526 = vmatpush1.msra.mxu0 0.0
    %1527 = vmatprep.subr.mxu0 0.0
    %1528 = vmatpush1.msra.mxu0 0.0
    %1529 = vmatprep.subr.mxu0 0.0
    %1530 = vmatpush1.msra.mxu0 0.0
    %1531 = vmatprep.subr.mxu0 0.0
    %1532 = vmatpush1.msra.mxu0 0.0
    %1533 = vmatprep.subr.mxu0 0.0
    %1534 = vmatpush1.msra.mxu0 0.0
    %1535 = vmatprep.subr.mxu0 0.0
    %1536 = vmatpush1.msra.mxu0 0.0
    %1537 = vmatprep.subr.mxu0 0.0
    %1538 = vmatpush1.msra.mxu0 0.0
    %1539 = vmatprep.subr.mxu0 0.0
    %1540 = vmatpush1.msra.mxu0 0.0
    %1541 = vmatprep.subr.mxu0 0.0
    %1542 = vmatpush1.msra.mxu0 0.0
    %1543 = vmatprep.subr.mxu0 0.0
    %1544 = vmatpush1.msra.mxu0 0.0
    %1545 = vmatprep.subr.mxu0 0.0
    %1546 = vmatpush1.msra.mxu0 0.0
    %1547 = vmatprep.subr.mxu0 0.0
    %1548 = vmatpush1.msra.mxu0 %v88
    %1549 = vmatprep.subr.mxu0 0.0
    %1550 = vmatpush2.msra.mxu0 0.0
    %1551 = vmatprep.subr.mxu0 0.0
    %1552 = vmatpush2.msra.mxu0 0.0
    %1553 = vmatprep.subr.mxu0 0.0
    %1554 = vmatpush2.msra.mxu0 0.0
    %1555 = vmatprep.subr.mxu0 0.0
    %1556 = vmatpush2.msra.mxu0 0.0
    %1557 = vmatprep.subr.mxu0 0.0
    %1558 = vmatpush2.msra.mxu0 0.0
    %1559 = vmatprep.subr.mxu0 0.0
    %1560 = vmatpush2.msra.mxu0 0.0
    %1561 = vmatprep.subr.mxu0 0.0
    %1562 = vmatpush2.msra.mxu0 0.0
    %1563 = vmatprep.subr.mxu0 0.0
    %1564 = vmatpush2.msra.mxu0 0.0
    %1565 = vmatprep.subr.mxu0 0.0
    %1566 = vmatpush2.msra.mxu0 0.0
    %1567 = vmatprep.subr.mxu0 0.0
    %1568 = vmatpush2.msra.mxu0 0.0
    %1569 = vmatprep.subr.mxu0 0.0
    %1570 = vmatpush2.msra.mxu0 0.0
    %1571 = vmatprep.subr.mxu0 0.0
    %1572 = vmatpush2.msra.mxu0 0.0
    %1573 = vmatprep.subr.mxu0 0.0
    %1574 = vmatpush2.msra.mxu0 0.0
    %1575 = vmatprep.subr.mxu0 0.0
    %1576 = vmatpush2.msra.mxu0 0.0
    %1577 = vmatprep.subr.mxu0 0.0
    %1578 = vmatpush2.msra.mxu0 0.0
    %1579 = vmatprep.subr.mxu0 0.0
    %1580 = vmatpush2.msra.mxu0 0.0
    %1581 = vmatprep.mubr.f32.mxu0 0.0
    %1582 = vmatmul.mubr.f32.gmra.mxu0 %v1515
    %v1583 = vpop.f32.mrf.mxu0
    %v1584 = vadd.f32 0.0, %v1583
    %v1585 = vpop.f32.mrf.mxu0
    %1586 = vdwg.mxu0
    %v1588 = vsel %vm1337, %v1499, 0
    %1590 = vmatprep.subr.mxu0 0.0
    %1591 = vmatpush1.msra.mxu0 0.0
    %1592 = vmatprep.subr.mxu0 0.0
    %1593 = vmatpush1.msra.mxu0 0.0
    %1594 = vmatprep.subr.mxu0 0.0
    %1595 = vmatpush1.msra.mxu0 0.0
    %1596 = vmatprep.subr.mxu0 0.0
    %1597 = vmatpush1.msra.mxu0 0.0
    %1598 = vmatprep.subr.mxu0 0.0
    %1599 = vmatpush1.msra.mxu0 0.0
    %1600 = vmatprep.subr.mxu0 0.0
    %1601 = vmatpush1.msra.mxu0 0.0
    %1602 = vmatprep.subr.mxu0 0.0
    %1603 = vmatpush1.msra.mxu0 0.0
    %1604 = vmatprep.subr.mxu0 0.0
    %1605 = vmatpush1.msra.mxu0 0.0
    %1606 = vmatprep.subr.mxu0 0.0
    %1607 = vmatpush1.msra.mxu0 0.0
    %1608 = vmatprep.subr.mxu0 0.0
    %1609 = vmatpush1.msra.mxu0 0.0
    %1610 = vmatprep.subr.mxu0 0.0
    %1611 = vmatpush1.msra.mxu0 0.0
    %1612 = vmatprep.subr.mxu0 0.0
    %1613 = vmatpush1.msra.mxu0 0.0
    %1614 = vmatprep.subr.mxu0 0.0
    %1615 = vmatpush1.msra.mxu0 0.0
    %1616 = vmatprep.subr.mxu0 0.0
    %1617 = vmatpush1.msra.mxu0 0.0
    %1618 = vmatprep.subr.mxu0 0.0
    %1619 = vmatpush1.msra.mxu0 0.0
    %1620 = vmatprep.subr.mxu0 0.0
    %1621 = vmatpush1.msra.mxu0 %v89
    %1622 = vmatprep.subr.mxu0 0.0
    %1623 = vmatpush2.msra.mxu0 0.0
    %1624 = vmatprep.subr.mxu0 0.0
    %1625 = vmatpush2.msra.mxu0 0.0
    %1626 = vmatprep.subr.mxu0 0.0
    %1627 = vmatpush2.msra.mxu0 0.0
    %1628 = vmatprep.subr.mxu0 0.0
    %1629 = vmatpush2.msra.mxu0 0.0
    %1630 = vmatprep.subr.mxu0 0.0
    %1631 = vmatpush2.msra.mxu0 0.0
    %1632 = vmatprep.subr.mxu0 0.0
    %1633 = vmatpush2.msra.mxu0 0.0
    %1634 = vmatprep.subr.mxu0 0.0
    %1635 = vmatpush2.msra.mxu0 0.0
    %1636 = vmatprep.subr.mxu0 0.0
    %1637 = vmatpush2.msra.mxu0 0.0
    %1638 = vmatprep.subr.mxu0 0.0
    %1639 = vmatpush2.msra.mxu0 0.0
    %1640 = vmatprep.subr.mxu0 0.0
    %1641 = vmatpush2.msra.mxu0 0.0
    %1642 = vmatprep.subr.mxu0 0.0
    %1643 = vmatpush2.msra.mxu0 0.0
    %1644 = vmatprep.subr.mxu0 0.0
    %1645 = vmatpush2.msra.mxu0 0.0
    %1646 = vmatprep.subr.mxu0 0.0
    %1647 = vmatpush2.msra.mxu0 0.0
    %1648 = vmatprep.subr.mxu0 0.0
    %1649 = vmatpush2.msra.mxu0 0.0
    %1650 = vmatprep.subr.mxu0 0.0
    %1651 = vmatpush2.msra.mxu0 0.0
    %1652 = vmatprep.subr.mxu0 0.0
    %1653 = vmatpush2.msra.mxu0 0.0
    %1654 = vmatprep.mubr.f32.mxu0 0.0
    %1655 = vmatmul.mubr.f32.gmra.mxu0 %v1588
    %v1656 = vpop.f32.mrf.mxu0
    %v1657 = vadd.f32 0.0, %v1656
    %v1658 = vpop.f32.mrf.mxu0
    %1659 = vdwg.mxu0
    %v1661 = vsel %vm1337, %v1500, 0
    %1663 = vmatprep.subr.mxu0 0.0
    %1664 = vmatpush1.msra.mxu0 0.0
    %1665 = vmatprep.subr.mxu0 0.0
    %1666 = vmatpush1.msra.mxu0 0.0
    %1667 = vmatprep.subr.mxu0 0.0
    %1668 = vmatpush1.msra.mxu0 0.0
    %1669 = vmatprep.subr.mxu0 0.0
    %1670 = vmatpush1.msra.mxu0 0.0
    %1671 = vmatprep.subr.mxu0 0.0
    %1672 = vmatpush1.msra.mxu0 0.0
    %1673 = vmatprep.subr.mxu0 0.0
    %1674 = vmatpush1.msra.mxu0 0.0
    %1675 = vmatprep.subr.mxu0 0.0
    %1676 = vmatpush1.msra.mxu0 0.0
    %1677 = vmatprep.subr.mxu0 0.0
    %1678 = vmatpush1.msra.mxu0 0.0
    %1679 = vmatprep.subr.mxu0 0.0
    %1680 = vmatpush1.msra.mxu0 0.0
    %1681 = vmatprep.subr.mxu0 0.0
    %1682 = vmatpush1.msra.mxu0 0.0
    %1683 = vmatprep.subr.mxu0 0.0
    %1684 = vmatpush1.msra.mxu0 0.0
    %1685 = vmatprep.subr.mxu0 0.0
    %1686 = vmatpush1.msra.mxu0 0.0
    %1687 = vmatprep.subr.mxu0 0.0
    %1688 = vmatpush1.msra.mxu0 0.0
    %1689 = vmatprep.subr.mxu0 0.0
    %1690 = vmatpush1.msra.mxu0 0.0
    %1691 = vmatprep.subr.mxu0 0.0
    %1692 = vmatpush1.msra.mxu0 0.0
    %1693 = vmatprep.subr.mxu0 0.0
    %1694 = vmatpush1.msra.mxu0 %v90
    %1695 = vmatprep.subr.mxu0 0.0
    %1696 = vmatpush2.msra.mxu0 0.0
    %1697 = vmatprep.subr.mxu0 0.0
    %1698 = vmatpush2.msra.mxu0 0.0
    %1699 = vmatprep.subr.mxu0 0.0
    %1700 = vmatpush2.msra.mxu0 0.0
    %1701 = vmatprep.subr.mxu0 0.0
    %1702 = vmatpush2.msra.mxu0 0.0
    %1703 = vmatprep.subr.mxu0 0.0
    %1704 = vmatpush2.msra.mxu0 0.0
    %1705 = vmatprep.subr.mxu0 0.0
    %1706 = vmatpush2.msra.mxu0 0.0
    %1707 = vmatprep.subr.mxu0 0.0
    %1708 = vmatpush2.msra.mxu0 0.0
    %1709 = vmatprep.subr.mxu0 0.0
    %1710 = vmatpush2.msra.mxu0 0.0
    %1711 = vmatprep.subr.mxu0 0.0
    %1712 = vmatpush2.msra.mxu0 0.0
    %1713 = vmatprep.subr.mxu0 0.0
    %1714 = vmatpush2.msra.mxu0 0.0
    %1715 = vmatprep.subr.mxu0 0.0
    %1716 = vmatpush2.msra.mxu0 0.0
    %1717 = vmatprep.subr.mxu0 0.0
    %1718 = vmatpush2.msra.mxu0 0.0
    %1719 = vmatprep.subr.mxu0 0.0
    %1720 = vmatpush2.msra.mxu0 0.0
    %1721 = vmatprep.subr.mxu0 0.0
    %1722 = vmatpush2.msra.mxu0 0.0
    %1723 = vmatprep.subr.mxu0 0.0
    %1724 = vmatpush2.msra.mxu0 0.0
    %1725 = vmatprep.subr.mxu0 0.0
    %1726 = vmatpush2.msra.mxu0 0.0
    %1727 = vmatprep.mubr.f32.mxu0 0.0
    %1728 = vmatmul.mubr.f32.gmra.mxu0 %v1661
    %v1729 = vpop.f32.mrf.mxu0
    %v1730 = vadd.f32 0.0, %v1729
    %v1731 = vpop.f32.mrf.mxu0
    %1732 = vdwg.mxu0
    %v1734 = vsel %vm1337, %v1501, 0
    %1736 = vmatprep.subr.mxu0 0.0
    %1737 = vmatpush1.msra.mxu0 0.0
    %1738 = vmatprep.subr.mxu0 0.0
    %1739 = vmatpush1.msra.mxu0 0.0
    %1740 = vmatprep.subr.mxu0 0.0
    %1741 = vmatpush1.msra.mxu0 0.0
    %1742 = vmatprep.subr.mxu0 0.0
    %1743 = vmatpush1.msra.mxu0 0.0
    %1744 = vmatprep.subr.mxu0 0.0
    %1745 = vmatpush1.msra.mxu0 0.0
    %1746 = vmatprep.subr.mxu0 0.0
    %1747 = vmatpush1.msra.mxu0 0.0
    %1748 = vmatprep.subr.mxu0 0.0
    %1749 = vmatpush1.msra.mxu0 0.0
    %1750 = vmatprep.subr.mxu0 0.0
    %1751 = vmatpush1.msra.mxu0 0.0
    %1752 = vmatprep.subr.mxu0 0.0
    %1753 = vmatpush1.msra.mxu0 0.0
    %1754 = vmatprep.subr.mxu0 0.0
    %1755 = vmatpush1.msra.mxu0 0.0
    %1756 = vmatprep.subr.mxu0 0.0
    %1757 = vmatpush1.msra.mxu0 0.0
    %1758 = vmatprep.subr.mxu0 0.0
    %1759 = vmatpush1.msra.mxu0 0.0
    %1760 = vmatprep.subr.mxu0 0.0
    %1761 = vmatpush1.msra.mxu0 0.0
    %1762 = vmatprep.subr.mxu0 0.0
    %1763 = vmatpush1.msra.mxu0 0.0
    %1764 = vmatprep.subr.mxu0 0.0
    %1765 = vmatpush1.msra.mxu0 0.0
    %1766 = vmatprep.subr.mxu0 0.0
    %1767 = vmatpush1.msra.mxu0 %v91
    %1768 = vmatprep.subr.mxu0 0.0
    %1769 = vmatpush2.msra.mxu0 0.0
    %1770 = vmatprep.subr.mxu0 0.0
    %1771 = vmatpush2.msra.mxu0 0.0
    %1772 = vmatprep.subr.mxu0 0.0
    %1773 = vmatpush2.msra.mxu0 0.0
    %1774 = vmatprep.subr.mxu0 0.0
    %1775 = vmatpush2.msra.mxu0 0.0
    %1776 = vmatprep.subr.mxu0 0.0
    %1777 = vmatpush2.msra.mxu0 0.0
    %1778 = vmatprep.subr.mxu0 0.0
    %1779 = vmatpush2.msra.mxu0 0.0
    %1780 = vmatprep.subr.mxu0 0.0
    %1781 = vmatpush2.msra.mxu0 0.0
    %1782 = vmatprep.subr.mxu0 0.0
    %1783 = vmatpush2.msra.mxu0 0.0
    %1784 = vmatprep.subr.mxu0 0.0
    %1785 = vmatpush2.msra.mxu0 0.0
    %1786 = vmatprep.subr.mxu0 0.0
    %1787 = vmatpush2.msra.mxu0 0.0
    %1788 = vmatprep.subr.mxu0 0.0
    %1789 = vmatpush2.msra.mxu0 0.0
    %1790 = vmatprep.subr.mxu0 0.0
    %1791 = vmatpush2.msra.mxu0 0.0
    %1792 = vmatprep.subr.mxu0 0.0
    %1793 = vmatpush2.msra.mxu0 0.0
    %1794 = vmatprep.subr.mxu0 0.0
    %1795 = vmatpush2.msra.mxu0 0.0
    %1796 = vmatprep.subr.mxu0 0.0
    %1797 = vmatpush2.msra.mxu0 0.0
    %1798 = vmatprep.subr.mxu0 0.0
    %1799 = vmatpush2.msra.mxu0 0.0
    %1800 = vmatprep.mubr.f32.mxu0 0.0
    %1801 = vmatmul.mubr.f32.gmra.mxu0 %v1734
    %v1802 = vpop.f32.mrf.mxu0
    %v1803 = vadd.f32 0.0, %v1802
    %v1804 = vpop.f32.mrf.mxu0
    %1805 = vdwg.mxu0
    %v1807 = vsel %vm1337, %v1502, 0
    %1809 = vmatprep.subr.mxu0 0.0
    %1810 = vmatpush1.msra.mxu0 0.0
    %1811 = vmatprep.subr.mxu0 0.0
    %1812 = vmatpush1.msra.mxu0 0.0
    %1813 = vmatprep.subr.mxu0 0.0
    %1814 = vmatpush1.msra.mxu0 0.0
    %1815 = vmatprep.subr.mxu0 0.0
    %1816 = vmatpush1.msra.mxu0 0.0
    %1817 = vmatprep.subr.mxu0 0.0
    %1818 = vmatpush1.msra.mxu0 0.0
    %1819 = vmatprep.subr.mxu0 0.0
    %1820 = vmatpush1.msra.mxu0 0.0
    %1821 = vmatprep.subr.mxu0 0.0
    %1822 = vmatpush1.msra.mxu0 0.0
    %1823 = vmatprep.subr.mxu0 0.0
    %1824 = vmatpush1.msra.mxu0 0.0
    %1825 = vmatprep.subr.mxu0 0.0
    %1826 = vmatpush1.msra.mxu0 0.0
    %1827 = vmatprep.subr.mxu0 0.0
    %1828 = vmatpush1.msra.mxu0 0.0
    %1829 = vmatprep.subr.mxu0 0.0
    %1830 = vmatpush1.msra.mxu0 0.0
    %1831 = vmatprep.subr.mxu0 0.0
    %1832 = vmatpush1.msra.mxu0 0.0
    %1833 = vmatprep.subr.mxu0 0.0
    %1834 = vmatpush1.msra.mxu0 0.0
    %1835 = vmatprep.subr.mxu0 0.0
    %1836 = vmatpush1.msra.mxu0 0.0
    %1837 = vmatprep.subr.mxu0 0.0
    %1838 = vmatpush1.msra.mxu0 0.0
    %1839 = vmatprep.subr.mxu0 0.0
    %1840 = vmatpush1.msra.mxu0 %v92
    %1841 = vmatprep.subr.mxu0 0.0
    %1842 = vmatpush2.msra.mxu0 0.0
    %1843 = vmatprep.subr.mxu0 0.0
    %1844 = vmatpush2.msra.mxu0 0.0
    %1845 = vmatprep.subr.mxu0 0.0
    %1846 = vmatpush2.msra.mxu0 0.0
    %1847 = vmatprep.subr.mxu0 0.0
    %1848 = vmatpush2.msra.mxu0 0.0
    %1849 = vmatprep.subr.mxu0 0.0
    %1850 = vmatpush2.msra.mxu0 0.0
    %1851 = vmatprep.subr.mxu0 0.0
    %1852 = vmatpush2.msra.mxu0 0.0
    %1853 = vmatprep.subr.mxu0 0.0
    %1854 = vmatpush2.msra.mxu0 0.0
    %1855 = vmatprep.subr.mxu0 0.0
    %1856 = vmatpush2.msra.mxu0 0.0
    %1857 = vmatprep.subr.mxu0 0.0
    %1858 = vmatpush2.msra.mxu0 0.0
    %1859 = vmatprep.subr.mxu0 0.0
    %1860 = vmatpush2.msra.mxu0 0.0
    %1861 = vmatprep.subr.mxu0 0.0
    %1862 = vmatpush2.msra.mxu0 0.0
    %1863 = vmatprep.subr.mxu0 0.0
    %1864 = vmatpush2.msra.mxu0 0.0
    %1865 = vmatprep.subr.mxu0 0.0
    %1866 = vmatpush2.msra.mxu0 0.0
    %1867 = vmatprep.subr.mxu0 0.0
    %1868 = vmatpush2.msra.mxu0 0.0
    %1869 = vmatprep.subr.mxu0 0.0
    %1870 = vmatpush2.msra.mxu0 0.0
    %1871 = vmatprep.subr.mxu0 0.0
    %1872 = vmatpush2.msra.mxu0 0.0
    %1873 = vmatprep.mubr.f32.mxu0 0.0
    %1874 = vmatmul.mubr.f32.gmra.mxu0 %v1807
    %v1875 = vpop.f32.mrf.mxu0
    %v1876 = vadd.f32 0.0, %v1875
    %v1877 = vpop.f32.mrf.mxu0
    %1878 = vdwg.mxu0
    %v1880 = vsel %vm1337, %v1503, 0
    %1882 = vmatprep.subr.mxu0 0.0
    %1883 = vmatpush1.msra.mxu0 0.0
    %1884 = vmatprep.subr.mxu0 0.0
    %1885 = vmatpush1.msra.mxu0 0.0
    %1886 = vmatprep.subr.mxu0 0.0
    %1887 = vmatpush1.msra.mxu0 0.0
    %1888 = vmatprep.subr.mxu0 0.0
    %1889 = vmatpush1.msra.mxu0 0.0
    %1890 = vmatprep.subr.mxu0 0.0
    %1891 = vmatpush1.msra.mxu0 0.0
    %1892 = vmatprep.subr.mxu0 0.0
    %1893 = vmatpush1.msra.mxu0 0.0
    %1894 = vmatprep.subr.mxu0 0.0
    %1895 = vmatpush1.msra.mxu0 0.0
    %1896 = vmatprep.subr.mxu0 0.0
    %1897 = vmatpush1.msra.mxu0 0.0
    %1898 = vmatprep.subr.mxu0 0.0
    %1899 = vmatpush1.msra.mxu0 0.0
    %1900 = vmatprep.subr.mxu0 0.0
    %1901 = vmatpush1.msra.mxu0 0.0
    %1902 = vmatprep.subr.mxu0 0.0
    %1903 = vmatpush1.msra.mxu0 0.0
    %1904 = vmatprep.subr.mxu0 0.0
    %1905 = vmatpush1.msra.mxu0 0.0
    %1906 = vmatprep.subr.mxu0 0.0
    %1907 = vmatpush1.msra.mxu0 0.0
    %1908 = vmatprep.subr.mxu0 0.0
    %1909 = vmatpush1.msra.mxu0 0.0
    %1910 = vmatprep.subr.mxu0 0.0
    %1911 = vmatpush1.msra.mxu0 0.0
    %1912 = vmatprep.subr.mxu0 0.0
    %1913 = vmatpush1.msra.mxu0 %v93
    %1914 = vmatprep.subr.mxu0 0.0
    %1915 = vmatpush2.msra.mxu0 0.0
    %1916 = vmatprep.subr.mxu0 0.0
    %1917 = vmatpush2.msra.mxu0 0.0
    %1918 = vmatprep.subr.mxu0 0.0
    %1919 = vmatpush2.msra.mxu0 0.0
    %1920 = vmatprep.subr.mxu0 0.0
    %1921 = vmatpush2.msra.mxu0 0.0
    %1922 = vmatprep.subr.mxu0 0.0
    %1923 = vmatpush2.msra.mxu0 0.0
    %1924 = vmatprep.subr.mxu0 0.0
    %1925 = vmatpush2.msra.mxu0 0.0
    %1926 = vmatprep.subr.mxu0 0.0
    %1927 = vmatpush2.msra.mxu0 0.0
    %1928 = vmatprep.subr.mxu0 0.0
    %1929 = vmatpush2.msra.mxu0 0.0
    %1930 = vmatprep.subr.mxu0 0.0
    %1931 = vmatpush2.msra.mxu0 0.0
    %1932 = vmatprep.subr.mxu0 0.0
    %1933 = vmatpush2.msra.mxu0 0.0
    %1934 = vmatprep.subr.mxu0 0.0
    %1935 = vmatpush2.msra.mxu0 0.0
    %1936 = vmatprep.subr.mxu0 0.0
    %1937 = vmatpush2.msra.mxu0 0.0
    %1938 = vmatprep.subr.mxu0 0.0
    %1939 = vmatpush2.msra.mxu0 0.0
    %1940 = vmatprep.subr.mxu0 0.0
    %1941 = vmatpush2.msra.mxu0 0.0
    %1942 = vmatprep.subr.mxu0 0.0
    %1943 = vmatpush2.msra.mxu0 0.0
    %1944 = vmatprep.subr.mxu0 0.0
    %1945 = vmatpush2.msra.mxu0 0.0
    %1946 = vmatprep.mubr.f32.mxu0 0.0
    %1947 = vmatmul.mubr.f32.gmra.mxu0 %v1880
    %v1948 = vpop.f32.mrf.mxu0
    %v1949 = vadd.f32 0.0, %v1948
    %v1950 = vpop.f32.mrf.mxu0
    %1951 = vdwg.mxu0
    %v1953 = vsel %vm1337, %v1504, 0
    %1955 = vmatprep.subr.mxu0 0.0
    %1956 = vmatpush1.msra.mxu0 0.0
    %1957 = vmatprep.subr.mxu0 0.0
    %1958 = vmatpush1.msra.mxu0 0.0
    %1959 = vmatprep.subr.mxu0 0.0
    %1960 = vmatpush1.msra.mxu0 0.0
    %1961 = vmatprep.subr.mxu0 0.0
    %1962 = vmatpush1.msra.mxu0 0.0
    %1963 = vmatprep.subr.mxu0 0.0
    %1964 = vmatpush1.msra.mxu0 0.0
    %1965 = vmatprep.subr.mxu0 0.0
    %1966 = vmatpush1.msra.mxu0 0.0
    %1967 = vmatprep.subr.mxu0 0.0
    %1968 = vmatpush1.msra.mxu0 0.0
    %1969 = vmatprep.subr.mxu0 0.0
    %1970 = vmatpush1.msra.mxu0 0.0
    %1971 = vmatprep.subr.mxu0 0.0
    %1972 = vmatpush1.msra.mxu0 0.0
    %1973 = vmatprep.subr.mxu0 0.0
    %1974 = vmatpush1.msra.mxu0 0.0
    %1975 = vmatprep.subr.mxu0 0.0
    %1976 = vmatpush1.msra.mxu0 0.0
    %1977 = vmatprep.subr.mxu0 0.0
    %1978 = vmatpush1.msra.mxu0 0.0
    %1979 = vmatprep.subr.mxu0 0.0
    %1980 = vmatpush1.msra.mxu0 0.0
    %1981 = vmatprep.subr.mxu0 0.0
    %1982 = vmatpush1.msra.mxu0 0.0
    %1983 = vmatprep.subr.mxu0 0.0
    %1984 = vmatpush1.msra.mxu0 0.0
    %1985 = vmatprep.subr.mxu0 0.0
    %1986 = vmatpush1.msra.mxu0 %v94
    %1987 = vmatprep.subr.mxu0 0.0
    %1988 = vmatpush2.msra.mxu0 0.0
    %1989 = vmatprep.subr.mxu0 0.0
    %1990 = vmatpush2.msra.mxu0 0.0
    %1991 = vmatprep.subr.mxu0 0.0
    %1992 = vmatpush2.msra.mxu0 0.0
    %1993 = vmatprep.subr.mxu0 0.0
    %1994 = vmatpush2.msra.mxu0 0.0
    %1995 = vmatprep.subr.mxu0 0.0
    %1996 = vmatpush2.msra.mxu0 0.0
    %1997 = vmatprep.subr.mxu0 0.0
    %1998 = vmatpush2.msra.mxu0 0.0
    %1999 = vmatprep.subr.mxu0 0.0
    %2000 = vmatpush2.msra.mxu0 0.0
    %2001 = vmatprep.subr.mxu0 0.0
    %2002 = vmatpush2.msra.mxu0 0.0
    %2003 = vmatprep.subr.mxu0 0.0
    %2004 = vmatpush2.msra.mxu0 0.0
    %2005 = vmatprep.subr.mxu0 0.0
    %2006 = vmatpush2.msra.mxu0 0.0
    %2007 = vmatprep.subr.mxu0 0.0
    %2008 = vmatpush2.msra.mxu0 0.0
    %2009 = vmatprep.subr.mxu0 0.0
    %2010 = vmatpush2.msra.mxu0 0.0
    %2011 = vmatprep.subr.mxu0 0.0
    %2012 = vmatpush2.msra.mxu0 0.0
    %2013 = vmatprep.subr.mxu0 0.0
    %2014 = vmatpush2.msra.mxu0 0.0
    %2015 = vmatprep.subr.mxu0 0.0
    %2016 = vmatpush2.msra.mxu0 0.0
    %2017 = vmatprep.subr.mxu0 0.0
    %2018 = vmatpush2.msra.mxu0 0.0
    %2019 = vmatprep.mubr.f32.mxu0 0.0
    %2020 = vmatmul.mubr.f32.gmra.mxu0 %v1953
    %v2021 = vpop.f32.mrf.mxu0
    %v2022 = vadd.f32 0.0, %v2021
    %v2023 = vpop.f32.mrf.mxu0
    %2024 = vdwg.mxu0
    %v2026 = vsel %vm1337, %v1505, 0
    %2028 = vmatprep.subr.mxu0 0.0
    %2029 = vmatpush1.msra.mxu0 0.0
    %2030 = vmatprep.subr.mxu0 0.0
    %2031 = vmatpush1.msra.mxu0 0.0
    %2032 = vmatprep.subr.mxu0 0.0
    %2033 = vmatpush1.msra.mxu0 0.0
    %2034 = vmatprep.subr.mxu0 0.0
    %2035 = vmatpush1.msra.mxu0 0.0
    %2036 = vmatprep.subr.mxu0 0.0
    %2037 = vmatpush1.msra.mxu0 0.0
    %2038 = vmatprep.subr.mxu0 0.0
    %2039 = vmatpush1.msra.mxu0 0.0
    %2040 = vmatprep.subr.mxu0 0.0
    %2041 = vmatpush1.msra.mxu0 0.0
    %2042 = vmatprep.subr.mxu0 0.0
    %2043 = vmatpush1.msra.mxu0 0.0
    %2044 = vmatprep.subr.mxu0 0.0
    %2045 = vmatpush1.msra.mxu0 0.0
    %2046 = vmatprep.subr.mxu0 0.0
    %2047 = vmatpush1.msra.mxu0 0.0
    %2048 = vmatprep.subr.mxu0 0.0
    %2049 = vmatpush1.msra.mxu0 0.0
    %2050 = vmatprep.subr.mxu0 0.0
    %2051 = vmatpush1.msra.mxu0 0.0
    %2052 = vmatprep.subr.mxu0 0.0
    %2053 = vmatpush1.msra.mxu0 0.0
    %2054 = vmatprep.subr.mxu0 0.0
    %2055 = vmatpush1.msra.mxu0 0.0
    %2056 = vmatprep.subr.mxu0 0.0
    %2057 = vmatpush1.msra.mxu0 0.0
    %2058 = vmatprep.subr.mxu0 0.0
    %2059 = vmatpush1.msra.mxu0 %v95
    %2060 = vmatprep.subr.mxu0 0.0
    %2061 = vmatpush2.msra.mxu0 0.0
    %2062 = vmatprep.subr.mxu0 0.0
    %2063 = vmatpush2.msra.mxu0 0.0
    %2064 = vmatprep.subr.mxu0 0.0
    %2065 = vmatpush2.msra.mxu0 0.0
    %2066 = vmatprep.subr.mxu0 0.0
    %2067 = vmatpush2.msra.mxu0 0.0
    %2068 = vmatprep.subr.mxu0 0.0
    %2069 = vmatpush2.msra.mxu0 0.0
    %2070 = vmatprep.subr.mxu0 0.0
    %2071 = vmatpush2.msra.mxu0 0.0
    %2072 = vmatprep.subr.mxu0 0.0
    %2073 = vmatpush2.msra.mxu0 0.0
    %2074 = vmatprep.subr.mxu0 0.0
    %2075 = vmatpush2.msra.mxu0 0.0
    %2076 = vmatprep.subr.mxu0 0.0
    %2077 = vmatpush2.msra.mxu0 0.0
    %2078 = vmatprep.subr.mxu0 0.0
    %2079 = vmatpush2.msra.mxu0 0.0
    %2080 = vmatprep.subr.mxu0 0.0
    %2081 = vmatpush2.msra.mxu0 0.0
    %2082 = vmatprep.subr.mxu0 0.0
    %2083 = vmatpush2.msra.mxu0 0.0
    %2084 = vmatprep.subr.mxu0 0.0
    %2085 = vmatpush2.msra.mxu0 0.0
    %2086 = vmatprep.subr.mxu0 0.0
    %2087 = vmatpush2.msra.mxu0 0.0
    %2088 = vmatprep.subr.mxu0 0.0
    %2089 = vmatpush2.msra.mxu0 0.0
    %2090 = vmatprep.subr.mxu0 0.0
    %2091 = vmatpush2.msra.mxu0 0.0
    %2092 = vmatprep.mubr.f32.mxu0 0.0
    %2093 = vmatmul.mubr.f32.gmra.mxu0 %v2026
    %v2094 = vpop.f32.mrf.mxu0
    %v2095 = vadd.f32 0.0, %v2094
    %v2096 = vpop.f32.mrf.mxu0
    %2097 = vdwg.mxu0
    %v2099 = vsel %vm1337, %v1506, 0
    %2101 = vmatprep.subr.mxu0 0.0
    %2102 = vmatpush1.msra.mxu0 0.0
    %2103 = vmatprep.subr.mxu0 0.0
    %2104 = vmatpush1.msra.mxu0 0.0
    %2105 = vmatprep.subr.mxu0 0.0
    %2106 = vmatpush1.msra.mxu0 0.0
    %2107 = vmatprep.subr.mxu0 0.0
    %2108 = vmatpush1.msra.mxu0 0.0
    %2109 = vmatprep.subr.mxu0 0.0
    %2110 = vmatpush1.msra.mxu0 0.0
    %2111 = vmatprep.subr.mxu0 0.0
    %2112 = vmatpush1.msra.mxu0 0.0
    %2113 = vmatprep.subr.mxu0 0.0
    %2114 = vmatpush1.msra.mxu0 0.0
    %2115 = vmatprep.subr.mxu0 0.0
    %2116 = vmatpush1.msra.mxu0 0.0
    %2117 = vmatprep.subr.mxu0 0.0
    %2118 = vmatpush1.msra.mxu0 0.0
    %2119 = vmatprep.subr.mxu0 0.0
    %2120 = vmatpush1.msra.mxu0 0.0
    %2121 = vmatprep.subr.mxu0 0.0
    %2122 = vmatpush1.msra.mxu0 0.0
    %2123 = vmatprep.subr.mxu0 0.0
    %2124 = vmatpush1.msra.mxu0 0.0
    %2125 = vmatprep.subr.mxu0 0.0
    %2126 = vmatpush1.msra.mxu0 0.0
    %2127 = vmatprep.subr.mxu0 0.0
    %2128 = vmatpush1.msra.mxu0 0.0
    %2129 = vmatprep.subr.mxu0 0.0
    %2130 = vmatpush1.msra.mxu0 0.0
    %2131 = vmatprep.subr.mxu0 0.0
    %2132 = vmatpush1.msra.mxu0 %v96
    %2133 = vmatprep.subr.mxu0 0.0
    %2134 = vmatpush2.msra.mxu0 0.0
    %2135 = vmatprep.subr.mxu0 0.0
    %2136 = vmatpush2.msra.mxu0 0.0
    %2137 = vmatprep.subr.mxu0 0.0
    %2138 = vmatpush2.msra.mxu0 0.0
    %2139 = vmatprep.subr.mxu0 0.0
    %2140 = vmatpush2.msra.mxu0 0.0
    %2141 = vmatprep.subr.mxu0 0.0
    %2142 = vmatpush2.msra.mxu0 0.0
    %2143 = vmatprep.subr.mxu0 0.0
    %2144 = vmatpush2.msra.mxu0 0.0
    %2145 = vmatprep.subr.mxu0 0.0
    %2146 = vmatpush2.msra.mxu0 0.0
    %2147 = vmatprep.subr.mxu0 0.0
    %2148 = vmatpush2.msra.mxu0 0.0
    %2149 = vmatprep.subr.mxu0 0.0
    %2150 = vmatpush2.msra.mxu0 0.0
    %2151 = vmatprep.subr.mxu0 0.0
    %2152 = vmatpush2.msra.mxu0 0.0
    %2153 = vmatprep.subr.mxu0 0.0
    %2154 = vmatpush2.msra.mxu0 0.0
    %2155 = vmatprep.subr.mxu0 0.0
    %2156 = vmatpush2.msra.mxu0 0.0
    %2157 = vmatprep.subr.mxu0 0.0
    %2158 = vmatpush2.msra.mxu0 0.0
    %2159 = vmatprep.subr.mxu0 0.0
    %2160 = vmatpush2.msra.mxu0 0.0
    %2161 = vmatprep.subr.mxu0 0.0
    %2162 = vmatpush2.msra.mxu0 0.0
    %2163 = vmatprep.subr.mxu0 0.0
    %2164 = vmatpush2.msra.mxu0 0.0
    %2165 = vmatprep.mubr.f32.mxu0 0.0
    %2166 = vmatmul.mubr.f32.gmra.mxu0 %v2099
    %v2167 = vpop.f32.mrf.mxu0
    %v2168 = vadd.f32 0.0, %v2167
    %v2169 = vpop.f32.mrf.mxu0
    %2170 = vdwg.mxu0
    %v2172 = vsel %vm1337, %v1507, 0
    %2174 = vmatprep.subr.mxu0 0.0
    %2175 = vmatpush1.msra.mxu0 0.0
    %2176 = vmatprep.subr.mxu0 0.0
    %2177 = vmatpush1.msra.mxu0 0.0
    %2178 = vmatprep.subr.mxu0 0.0
    %2179 = vmatpush1.msra.mxu0 0.0
    %2180 = vmatprep.subr.mxu0 0.0
    %2181 = vmatpush1.msra.mxu0 0.0
    %2182 = vmatprep.subr.mxu0 0.0
    %2183 = vmatpush1.msra.mxu0 0.0
    %2184 = vmatprep.subr.mxu0 0.0
    %2185 = vmatpush1.msra.mxu0 0.0
    %2186 = vmatprep.subr.mxu0 0.0
    %2187 = vmatpush1.msra.mxu0 0.0
    %2188 = vmatprep.subr.mxu0 0.0
    %2189 = vmatpush1.msra.mxu0 0.0
    %2190 = vmatprep.subr.mxu0 0.0
    %2191 = vmatpush1.msra.mxu0 0.0
    %2192 = vmatprep.subr.mxu0 0.0
    %2193 = vmatpush1.msra.mxu0 0.0
    %2194 = vmatprep.subr.mxu0 0.0
    %2195 = vmatpush1.msra.mxu0 0.0
    %2196 = vmatprep.subr.mxu0 0.0
    %2197 = vmatpush1.msra.mxu0 0.0
    %2198 = vmatprep.subr.mxu0 0.0
    %2199 = vmatpush1.msra.mxu0 0.0
    %2200 = vmatprep.subr.mxu0 0.0
    %2201 = vmatpush1.msra.mxu0 0.0
    %2202 = vmatprep.subr.mxu0 0.0
    %2203 = vmatpush1.msra.mxu0 0.0
    %2204 = vmatprep.subr.mxu0 0.0
    %2205 = vmatpush1.msra.mxu0 %v97
    %2206 = vmatprep.subr.mxu0 0.0
    %2207 = vmatpush2.msra.mxu0 0.0
    %2208 = vmatprep.subr.mxu0 0.0
    %2209 = vmatpush2.msra.mxu0 0.0
    %2210 = vmatprep.subr.mxu0 0.0
    %2211 = vmatpush2.msra.mxu0 0.0
    %2212 = vmatprep.subr.mxu0 0.0
    %2213 = vmatpush2.msra.mxu0 0.0
    %2214 = vmatprep.subr.mxu0 0.0
    %2215 = vmatpush2.msra.mxu0 0.0
    %2216 = vmatprep.subr.mxu0 0.0
    %2217 = vmatpush2.msra.mxu0 0.0
    %2218 = vmatprep.subr.mxu0 0.0
    %2219 = vmatpush2.msra.mxu0 0.0
    %2220 = vmatprep.subr.mxu0 0.0
    %2221 = vmatpush2.msra.mxu0 0.0
    %2222 = vmatprep.subr.mxu0 0.0
    %2223 = vmatpush2.msra.mxu0 0.0
    %2224 = vmatprep.subr.mxu0 0.0
    %2225 = vmatpush2.msra.mxu0 0.0
    %2226 = vmatprep.subr.mxu0 0.0
    %2227 = vmatpush2.msra.mxu0 0.0
    %2228 = vmatprep.subr.mxu0 0.0
    %2229 = vmatpush2.msra.mxu0 0.0
    %2230 = vmatprep.subr.mxu0 0.0
    %2231 = vmatpush2.msra.mxu0 0.0
    %2232 = vmatprep.subr.mxu0 0.0
    %2233 = vmatpush2.msra.mxu0 0.0
    %2234 = vmatprep.subr.mxu0 0.0
    %2235 = vmatpush2.msra.mxu0 0.0
    %2236 = vmatprep.subr.mxu0 0.0
    %2237 = vmatpush2.msra.mxu0 0.0
    %2238 = vmatprep.mubr.f32.mxu0 0.0
    %2239 = vmatmul.mubr.f32.gmra.mxu0 %v2172
    %v2240 = vpop.f32.mrf.mxu0
    %v2241 = vadd.f32 0.0, %v2240
    %v2242 = vpop.f32.mrf.mxu0
    %2243 = vdwg.mxu0
    %v2245 = vsel %vm1337, %v1508, 0
    %2247 = vmatprep.subr.mxu0 0.0
    %2248 = vmatpush1.msra.mxu0 0.0
    %2249 = vmatprep.subr.mxu0 0.0
    %2250 = vmatpush1.msra.mxu0 0.0
    %2251 = vmatprep.subr.mxu0 0.0
    %2252 = vmatpush1.msra.mxu0 0.0
    %2253 = vmatprep.subr.mxu0 0.0
    %2254 = vmatpush1.msra.mxu0 0.0
    %2255 = vmatprep.subr.mxu0 0.0
    %2256 = vmatpush1.msra.mxu0 0.0
    %2257 = vmatprep.subr.mxu0 0.0
    %2258 = vmatpush1.msra.mxu0 0.0
    %2259 = vmatprep.subr.mxu0 0.0
    %2260 = vmatpush1.msra.mxu0 0.0
    %2261 = vmatprep.subr.mxu0 0.0
    %2262 = vmatpush1.msra.mxu0 0.0
    %2263 = vmatprep.subr.mxu0 0.0
    %2264 = vmatpush1.msra.mxu0 0.0
    %2265 = vmatprep.subr.mxu0 0.0
    %2266 = vmatpush1.msra.mxu0 0.0
    %2267 = vmatprep.subr.mxu0 0.0
    %2268 = vmatpush1.msra.mxu0 0.0
    %2269 = vmatprep.subr.mxu0 0.0
    %2270 = vmatpush1.msra.mxu0 0.0
    %2271 = vmatprep.subr.mxu0 0.0
    %2272 = vmatpush1.msra.mxu0 0.0
    %2273 = vmatprep.subr.mxu0 0.0
    %2274 = vmatpush1.msra.mxu0 0.0
    %2275 = vmatprep.subr.mxu0 0.0
    %2276 = vmatpush1.msra.mxu0 0.0
    %2277 = vmatprep.subr.mxu0 0.0
    %2278 = vmatpush1.msra.mxu0 %v98
    %2279 = vmatprep.subr.mxu0 0.0
    %2280 = vmatpush2.msra.mxu0 0.0
    %2281 = vmatprep.subr.mxu0 0.0
    %2282 = vmatpush2.msra.mxu0 0.0
    %2283 = vmatprep.subr.mxu0 0.0
    %2284 = vmatpush2.msra.mxu0 0.0
    %2285 = vmatprep.subr.mxu0 0.0
    %2286 = vmatpush2.msra.mxu0 0.0
    %2287 = vmatprep.subr.mxu0 0.0
    %2288 = vmatpush2.msra.mxu0 0.0
    %2289 = vmatprep.subr.mxu0 0.0
    %2290 = vmatpush2.msra.mxu0 0.0
    %2291 = vmatprep.subr.mxu0 0.0
    %2292 = vmatpush2.msra.mxu0 0.0
    %2293 = vmatprep.subr.mxu0 0.0
    %2294 = vmatpush2.msra.mxu0 0.0
    %2295 = vmatprep.subr.mxu0 0.0
    %2296 = vmatpush2.msra.mxu0 0.0
    %2297 = vmatprep.subr.mxu0 0.0
    %2298 = vmatpush2.msra.mxu0 0.0
    %2299 = vmatprep.subr.mxu0 0.0
    %2300 = vmatpush2.msra.mxu0 0.0
    %2301 = vmatprep.subr.mxu0 0.0
    %2302 = vmatpush2.msra.mxu0 0.0
    %2303 = vmatprep.subr.mxu0 0.0
    %2304 = vmatpush2.msra.mxu0 0.0
    %2305 = vmatprep.subr.mxu0 0.0
    %2306 = vmatpush2.msra.mxu0 0.0
    %2307 = vmatprep.subr.mxu0 0.0
    %2308 = vmatpush2.msra.mxu0 0.0
    %2309 = vmatprep.subr.mxu0 0.0
    %2310 = vmatpush2.msra.mxu0 0.0
    %2311 = vmatprep.mubr.f32.mxu0 0.0
    %2312 = vmatmul.mubr.f32.gmra.mxu0 %v2245
    %v2313 = vpop.f32.mrf.mxu0
    %v2314 = vadd.f32 0.0, %v2313
    %v2315 = vpop.f32.mrf.mxu0
    %2316 = vdwg.mxu0
    %v2318 = vsel %vm1337, %v1509, 0
    %2320 = vmatprep.subr.mxu0 0.0
    %2321 = vmatpush1.msra.mxu0 0.0
    %2322 = vmatprep.subr.mxu0 0.0
    %2323 = vmatpush1.msra.mxu0 0.0
    %2324 = vmatprep.subr.mxu0 0.0
    %2325 = vmatpush1.msra.mxu0 0.0
    %2326 = vmatprep.subr.mxu0 0.0
    %2327 = vmatpush1.msra.mxu0 0.0
    %2328 = vmatprep.subr.mxu0 0.0
    %2329 = vmatpush1.msra.mxu0 0.0
    %2330 = vmatprep.subr.mxu0 0.0
    %2331 = vmatpush1.msra.mxu0 0.0
    %2332 = vmatprep.subr.mxu0 0.0
    %2333 = vmatpush1.msra.mxu0 0.0
    %2334 = vmatprep.subr.mxu0 0.0
    %2335 = vmatpush1.msra.mxu0 0.0
    %2336 = vmatprep.subr.mxu0 0.0
    %2337 = vmatpush1.msra.mxu0 0.0
    %2338 = vmatprep.subr.mxu0 0.0
    %2339 = vmatpush1.msra.mxu0 0.0
    %2340 = vmatprep.subr.mxu0 0.0
    %2341 = vmatpush1.msra.mxu0 0.0
    %2342 = vmatprep.subr.mxu0 0.0
    %2343 = vmatpush1.msra.mxu0 0.0
    %2344 = vmatprep.subr.mxu0 0.0
    %2345 = vmatpush1.msra.mxu0 0.0
    %2346 = vmatprep.subr.mxu0 0.0
    %2347 = vmatpush1.msra.mxu0 0.0
    %2348 = vmatprep.subr.mxu0 0.0
    %2349 = vmatpush1.msra.mxu0 0.0
    %2350 = vmatprep.subr.mxu0 0.0
    %2351 = vmatpush1.msra.mxu0 %v99
    %2352 = vmatprep.subr.mxu0 0.0
    %2353 = vmatpush2.msra.mxu0 0.0
    %2354 = vmatprep.subr.mxu0 0.0
    %2355 = vmatpush2.msra.mxu0 0.0
    %2356 = vmatprep.subr.mxu0 0.0
    %2357 = vmatpush2.msra.mxu0 0.0
    %2358 = vmatprep.subr.mxu0 0.0
    %2359 = vmatpush2.msra.mxu0 0.0
    %2360 = vmatprep.subr.mxu0 0.0
    %2361 = vmatpush2.msra.mxu0 0.0
    %2362 = vmatprep.subr.mxu0 0.0
    %2363 = vmatpush2.msra.mxu0 0.0
    %2364 = vmatprep.subr.mxu0 0.0
    %2365 = vmatpush2.msra.mxu0 0.0
    %2366 = vmatprep.subr.mxu0 0.0
    %2367 = vmatpush2.msra.mxu0 0.0
    %2368 = vmatprep.subr.mxu0 0.0
    %2369 = vmatpush2.msra.mxu0 0.0
    %2370 = vmatprep.subr.mxu0 0.0
    %2371 = vmatpush2.msra.mxu0 0.0
    %2372 = vmatprep.subr.mxu0 0.0
    %2373 = vmatpush2.msra.mxu0 0.0
    %2374 = vmatprep.subr.mxu0 0.0
    %2375 = vmatpush2.msra.mxu0 0.0
    %2376 = vmatprep.subr.mxu0 0.0
    %2377 = vmatpush2.msra.mxu0 0.0
    %2378 = vmatprep.subr.mxu0 0.0
    %2379 = vmatpush2.msra.mxu0 0.0
    %2380 = vmatprep.subr.mxu0 0.0
    %2381 = vmatpush2.msra.mxu0 0.0
    %2382 = vmatprep.subr.mxu0 0.0
    %2383 = vmatpush2.msra.mxu0 0.0
    %2384 = vmatprep.mubr.f32.mxu0 0.0
    %2385 = vmatmul.mubr.f32.gmra.mxu0 %v2318
    %v2386 = vpop.f32.mrf.mxu0
    %v2387 = vadd.f32 0.0, %v2386
    %v2388 = vpop.f32.mrf.mxu0
    %2389 = vdwg.mxu0
    %v2391 = vsel %vm1337, %v1510, 0
    %2393 = vmatprep.subr.mxu0 0.0
    %2394 = vmatpush1.msra.mxu0 0.0
    %2395 = vmatprep.subr.mxu0 0.0
    %2396 = vmatpush1.msra.mxu0 0.0
    %2397 = vmatprep.subr.mxu0 0.0
    %2398 = vmatpush1.msra.mxu0 0.0
    %2399 = vmatprep.subr.mxu0 0.0
    %2400 = vmatpush1.msra.mxu0 0.0
    %2401 = vmatprep.subr.mxu0 0.0
    %2402 = vmatpush1.msra.mxu0 0.0
    %2403 = vmatprep.subr.mxu0 0.0
    %2404 = vmatpush1.msra.mxu0 0.0
    %2405 = vmatprep.subr.mxu0 0.0
    %2406 = vmatpush1.msra.mxu0 0.0
    %2407 = vmatprep.subr.mxu0 0.0
    %2408 = vmatpush1.msra.mxu0 0.0
    %2409 = vmatprep.subr.mxu0 0.0
    %2410 = vmatpush1.msra.mxu0 0.0
    %2411 = vmatprep.subr.mxu0 0.0
    %2412 = vmatpush1.msra.mxu0 0.0
    %2413 = vmatprep.subr.mxu0 0.0
    %2414 = vmatpush1.msra.mxu0 0.0
    %2415 = vmatprep.subr.mxu0 0.0
    %2416 = vmatpush1.msra.mxu0 0.0
    %2417 = vmatprep.subr.mxu0 0.0
    %2418 = vmatpush1.msra.mxu0 0.0
    %2419 = vmatprep.subr.mxu0 0.0
    %2420 = vmatpush1.msra.mxu0 0.0
    %2421 = vmatprep.subr.mxu0 0.0
    %2422 = vmatpush1.msra.mxu0 0.0
    %2423 = vmatprep.subr.mxu0 0.0
    %2424 = vmatpush1.msra.mxu0 %v100
    %2425 = vmatprep.subr.mxu0 0.0
    %2426 = vmatpush2.msra.mxu0 0.0
    %2427 = vmatprep.subr.mxu0 0.0
    %2428 = vmatpush2.msra.mxu0 0.0
    %2429 = vmatprep.subr.mxu0 0.0
    %2430 = vmatpush2.msra.mxu0 0.0
    %2431 = vmatprep.subr.mxu0 0.0
    %2432 = vmatpush2.msra.mxu0 0.0
    %2433 = vmatprep.subr.mxu0 0.0
    %2434 = vmatpush2.msra.mxu0 0.0
    %2435 = vmatprep.subr.mxu0 0.0
    %2436 = vmatpush2.msra.mxu0 0.0
    %2437 = vmatprep.subr.mxu0 0.0
    %2438 = vmatpush2.msra.mxu0 0.0
    %2439 = vmatprep.subr.mxu0 0.0
    %2440 = vmatpush2.msra.mxu0 0.0
    %2441 = vmatprep.subr.mxu0 0.0
    %2442 = vmatpush2.msra.mxu0 0.0
    %2443 = vmatprep.subr.mxu0 0.0
    %2444 = vmatpush2.msra.mxu0 0.0
    %2445 = vmatprep.subr.mxu0 0.0
    %2446 = vmatpush2.msra.mxu0 0.0
    %2447 = vmatprep.subr.mxu0 0.0
    %2448 = vmatpush2.msra.mxu0 0.0
    %2449 = vmatprep.subr.mxu0 0.0
    %2450 = vmatpush2.msra.mxu0 0.0
    %2451 = vmatprep.subr.mxu0 0.0
    %2452 = vmatpush2.msra.mxu0 0.0
    %2453 = vmatprep.subr.mxu0 0.0
    %2454 = vmatpush2.msra.mxu0 0.0
    %2455 = vmatprep.subr.mxu0 0.0
    %2456 = vmatpush2.msra.mxu0 0.0
    %2457 = vmatprep.mubr.f32.mxu0 0.0
    %2458 = vmatmul.mubr.f32.gmra.mxu0 %v2391
    %v2459 = vpop.f32.mrf.mxu0
    %v2460 = vadd.f32 0.0, %v2459
    %v2461 = vpop.f32.mrf.mxu0
    %2462 = vdwg.mxu0
    %v2464 = vsel %vm1337, %v1511, 0
    %2466 = vmatprep.subr.mxu0 0.0
    %2467 = vmatpush1.msra.mxu0 0.0
    %2468 = vmatprep.subr.mxu0 0.0
    %2469 = vmatpush1.msra.mxu0 0.0
    %2470 = vmatprep.subr.mxu0 0.0
    %2471 = vmatpush1.msra.mxu0 0.0
    %2472 = vmatprep.subr.mxu0 0.0
    %2473 = vmatpush1.msra.mxu0 0.0
    %2474 = vmatprep.subr.mxu0 0.0
    %2475 = vmatpush1.msra.mxu0 0.0
    %2476 = vmatprep.subr.mxu0 0.0
    %2477 = vmatpush1.msra.mxu0 0.0
    %2478 = vmatprep.subr.mxu0 0.0
    %2479 = vmatpush1.msra.mxu0 0.0
    %2480 = vmatprep.subr.mxu0 0.0
    %2481 = vmatpush1.msra.mxu0 0.0
    %2482 = vmatprep.subr.mxu0 0.0
    %2483 = vmatpush1.msra.mxu0 0.0
    %2484 = vmatprep.subr.mxu0 0.0
    %2485 = vmatpush1.msra.mxu0 0.0
    %2486 = vmatprep.subr.mxu0 0.0
    %2487 = vmatpush1.msra.mxu0 0.0
    %2488 = vmatprep.subr.mxu0 0.0
    %2489 = vmatpush1.msra.mxu0 0.0
    %2490 = vmatprep.subr.mxu0 0.0
    %2491 = vmatpush1.msra.mxu0 0.0
    %2492 = vmatprep.subr.mxu0 0.0
    %2493 = vmatpush1.msra.mxu0 0.0
    %2494 = vmatprep.subr.mxu0 0.0
    %2495 = vmatpush1.msra.mxu0 0.0
    %2496 = vmatprep.subr.mxu0 0.0
    %2497 = vmatpush1.msra.mxu0 %v101
    %2498 = vmatprep.subr.mxu0 0.0
    %2499 = vmatpush2.msra.mxu0 0.0
    %2500 = vmatprep.subr.mxu0 0.0
    %2501 = vmatpush2.msra.mxu0 0.0
    %2502 = vmatprep.subr.mxu0 0.0
    %2503 = vmatpush2.msra.mxu0 0.0
    %2504 = vmatprep.subr.mxu0 0.0
    %2505 = vmatpush2.msra.mxu0 0.0
    %2506 = vmatprep.subr.mxu0 0.0
    %2507 = vmatpush2.msra.mxu0 0.0
    %2508 = vmatprep.subr.mxu0 0.0
    %2509 = vmatpush2.msra.mxu0 0.0
    %2510 = vmatprep.subr.mxu0 0.0
    %2511 = vmatpush2.msra.mxu0 0.0
    %2512 = vmatprep.subr.mxu0 0.0
    %2513 = vmatpush2.msra.mxu0 0.0
    %2514 = vmatprep.subr.mxu0 0.0
    %2515 = vmatpush2.msra.mxu0 0.0
    %2516 = vmatprep.subr.mxu0 0.0
    %2517 = vmatpush2.msra.mxu0 0.0
    %2518 = vmatprep.subr.mxu0 0.0
    %2519 = vmatpush2.msra.mxu0 0.0
    %2520 = vmatprep.subr.mxu0 0.0
    %2521 = vmatpush2.msra.mxu0 0.0
    %2522 = vmatprep.subr.mxu0 0.0
    %2523 = vmatpush2.msra.mxu0 0.0
    %2524 = vmatprep.subr.mxu0 0.0
    %2525 = vmatpush2.msra.mxu0 0.0
    %2526 = vmatprep.subr.mxu0 0.0
    %2527 = vmatpush2.msra.mxu0 0.0
    %2528 = vmatprep.subr.mxu0 0.0
    %2529 = vmatpush2.msra.mxu0 0.0
    %2530 = vmatprep.mubr.f32.mxu0 0.0
    %2531 = vmatmul.mubr.f32.gmra.mxu0 %v2464
    %v2532 = vpop.f32.mrf.mxu0
    %v2533 = vadd.f32 0.0, %v2532
    %v2534 = vpop.f32.mrf.mxu0
    %2535 = vdwg.mxu0
    %v2537 = vsel %vm1337, %v1512, 0
    %2539 = vmatprep.subr.mxu0 0.0
    %2540 = vmatpush1.msra.mxu0 0.0
    %2541 = vmatprep.subr.mxu0 0.0
    %2542 = vmatpush1.msra.mxu0 0.0
    %2543 = vmatprep.subr.mxu0 0.0
    %2544 = vmatpush1.msra.mxu0 0.0
    %2545 = vmatprep.subr.mxu0 0.0
    %2546 = vmatpush1.msra.mxu0 0.0
    %2547 = vmatprep.subr.mxu0 0.0
    %2548 = vmatpush1.msra.mxu0 0.0
    %2549 = vmatprep.subr.mxu0 0.0
    %2550 = vmatpush1.msra.mxu0 0.0
    %2551 = vmatprep.subr.mxu0 0.0
    %2552 = vmatpush1.msra.mxu0 0.0
    %2553 = vmatprep.subr.mxu0 0.0
    %2554 = vmatpush1.msra.mxu0 0.0
    %2555 = vmatprep.subr.mxu0 0.0
    %2556 = vmatpush1.msra.mxu0 0.0
    %2557 = vmatprep.subr.mxu0 0.0
    %2558 = vmatpush1.msra.mxu0 0.0
    %2559 = vmatprep.subr.mxu0 0.0
    %2560 = vmatpush1.msra.mxu0 0.0
    %2561 = vmatprep.subr.mxu0 0.0
    %2562 = vmatpush1.msra.mxu0 0.0
    %2563 = vmatprep.subr.mxu0 0.0
    %2564 = vmatpush1.msra.mxu0 0.0
    %2565 = vmatprep.subr.mxu0 0.0
    %2566 = vmatpush1.msra.mxu0 0.0
    %2567 = vmatprep.subr.mxu0 0.0
    %2568 = vmatpush1.msra.mxu0 0.0
    %2569 = vmatprep.subr.mxu0 0.0
    %2570 = vmatpush1.msra.mxu0 %v102
    %2571 = vmatprep.subr.mxu0 0.0
    %2572 = vmatpush2.msra.mxu0 0.0
    %2573 = vmatprep.subr.mxu0 0.0
    %2574 = vmatpush2.msra.mxu0 0.0
    %2575 = vmatprep.subr.mxu0 0.0
    %2576 = vmatpush2.msra.mxu0 0.0
    %2577 = vmatprep.subr.mxu0 0.0
    %2578 = vmatpush2.msra.mxu0 0.0
    %2579 = vmatprep.subr.mxu0 0.0
    %2580 = vmatpush2.msra.mxu0 0.0
    %2581 = vmatprep.subr.mxu0 0.0
    %2582 = vmatpush2.msra.mxu0 0.0
    %2583 = vmatprep.subr.mxu0 0.0
    %2584 = vmatpush2.msra.mxu0 0.0
    %2585 = vmatprep.subr.mxu0 0.0
    %2586 = vmatpush2.msra.mxu0 0.0
    %2587 = vmatprep.subr.mxu0 0.0
    %2588 = vmatpush2.msra.mxu0 0.0
    %2589 = vmatprep.subr.mxu0 0.0
    %2590 = vmatpush2.msra.mxu0 0.0
    %2591 = vmatprep.subr.mxu0 0.0
    %2592 = vmatpush2.msra.mxu0 0.0
    %2593 = vmatprep.subr.mxu0 0.0
    %2594 = vmatpush2.msra.mxu0 0.0
    %2595 = vmatprep.subr.mxu0 0.0
    %2596 = vmatpush2.msra.mxu0 0.0
    %2597 = vmatprep.subr.mxu0 0.0
    %2598 = vmatpush2.msra.mxu0 0.0
    %2599 = vmatprep.subr.mxu0 0.0
    %2600 = vmatpush2.msra.mxu0 0.0
    %2601 = vmatprep.subr.mxu0 0.0
    %2602 = vmatpush2.msra.mxu0 0.0
    %2603 = vmatprep.mubr.f32.mxu0 0.0
    %2604 = vmatmul.mubr.f32.gmra.mxu0 %v2537
    %v2605 = vpop.f32.mrf.mxu0
    %v2606 = vadd.f32 0.0, %v2605
    %v2607 = vpop.f32.mrf.mxu0
    %2608 = vdwg.mxu0
    %v2610 = vsel %vm1337, %v1513, 0
    %2612 = vmatprep.subr.mxu0 0.0
    %2613 = vmatpush1.msra.mxu0 0.0
    %2614 = vmatprep.subr.mxu0 0.0
    %2615 = vmatpush1.msra.mxu0 0.0
    %2616 = vmatprep.subr.mxu0 0.0
    %2617 = vmatpush1.msra.mxu0 0.0
    %2618 = vmatprep.subr.mxu0 0.0
    %2619 = vmatpush1.msra.mxu0 0.0
    %2620 = vmatprep.subr.mxu0 0.0
    %2621 = vmatpush1.msra.mxu0 0.0
    %2622 = vmatprep.subr.mxu0 0.0
    %2623 = vmatpush1.msra.mxu0 0.0
    %2624 = vmatprep.subr.mxu0 0.0
    %2625 = vmatpush1.msra.mxu0 0.0
    %2626 = vmatprep.subr.mxu0 0.0
    %2627 = vmatpush1.msra.mxu0 0.0
    %2628 = vmatprep.subr.mxu0 0.0
    %2629 = vmatpush1.msra.mxu0 0.0
    %2630 = vmatprep.subr.mxu0 0.0
    %2631 = vmatpush1.msra.mxu0 0.0
    %2632 = vmatprep.subr.mxu0 0.0
    %2633 = vmatpush1.msra.mxu0 0.0
    %2634 = vmatprep.subr.mxu0 0.0
    %2635 = vmatpush1.msra.mxu0 0.0
    %2636 = vmatprep.subr.mxu0 0.0
    %2637 = vmatpush1.msra.mxu0 0.0
    %2638 = vmatprep.subr.mxu0 0.0
    %2639 = vmatpush1.msra.mxu0 0.0
    %2640 = vmatprep.subr.mxu0 0.0
    %2641 = vmatpush1.msra.mxu0 0.0
    %2642 = vmatprep.subr.mxu0 0.0
    %2643 = vmatpush1.msra.mxu0 %v103
    %2644 = vmatprep.subr.mxu0 0.0
    %2645 = vmatpush2.msra.mxu0 0.0
    %2646 = vmatprep.subr.mxu0 0.0
    %2647 = vmatpush2.msra.mxu0 0.0
    %2648 = vmatprep.subr.mxu0 0.0
    %2649 = vmatpush2.msra.mxu0 0.0
    %2650 = vmatprep.subr.mxu0 0.0
    %2651 = vmatpush2.msra.mxu0 0.0
    %2652 = vmatprep.subr.mxu0 0.0
    %2653 = vmatpush2.msra.mxu0 0.0
    %2654 = vmatprep.subr.mxu0 0.0
    %2655 = vmatpush2.msra.mxu0 0.0
    %2656 = vmatprep.subr.mxu0 0.0
    %2657 = vmatpush2.msra.mxu0 0.0
    %2658 = vmatprep.subr.mxu0 0.0
    %2659 = vmatpush2.msra.mxu0 0.0
    %2660 = vmatprep.subr.mxu0 0.0
    %2661 = vmatpush2.msra.mxu0 0.0
    %2662 = vmatprep.subr.mxu0 0.0
    %2663 = vmatpush2.msra.mxu0 0.0
    %2664 = vmatprep.subr.mxu0 0.0
    %2665 = vmatpush2.msra.mxu0 0.0
    %2666 = vmatprep.subr.mxu0 0.0
    %2667 = vmatpush2.msra.mxu0 0.0
    %2668 = vmatprep.subr.mxu0 0.0
    %2669 = vmatpush2.msra.mxu0 0.0
    %2670 = vmatprep.subr.mxu0 0.0
    %2671 = vmatpush2.msra.mxu0 0.0
    %2672 = vmatprep.subr.mxu0 0.0
    %2673 = vmatpush2.msra.mxu0 0.0
    %2674 = vmatprep.subr.mxu0 0.0
    %2675 = vmatpush2.msra.mxu0 0.0
    %2676 = vmatprep.mubr.f32.mxu0 0.0
    %2677 = vmatmul.mubr.f32.gmra.mxu0 %v2610
    %v2678 = vpop.f32.mrf.mxu0
    %v2679 = vadd.f32 0.0, %v2678
    %v2680 = vpop.f32.mrf.mxu0
    %2681 = vdwg.mxu0
    %2682 = vst.msk [vmem:[#allocation8] sm:$0xff] %vm104, %v1584
    %2683 = vst.msk [vmem:[#allocation8 + $0x8] sm:$0xff] %vm104, %v1657
    %2684 = vst.msk [vmem:[#allocation8 + $0x10] sm:$0xff] %vm104, %v1730
    %2685 = vst.msk [vmem:[#allocation8 + $0x18] sm:$0xff] %vm104, %v1803
    %2686 = vst.msk [vmem:[#allocation8 + $0x20] sm:$0xff] %vm104, %v1876
    %2687 = vst.msk [vmem:[#allocation8 + $0x28] sm:$0xff] %vm104, %v1949
    %2688 = vst.msk [vmem:[#allocation8 + $0x30] sm:$0xff] %vm104, %v2022
    %2689 = vst.msk [vmem:[#allocation8 + $0x38] sm:$0xff] %vm104, %v2095
    %2690 = vst.msk [vmem:[#allocation8 + $0x40] sm:$0xff] %vm104, %v2168
    %2691 = vst.msk [vmem:[#allocation8 + $0x48] sm:$0xff] %vm104, %v2241
    %2692 = vst.msk [vmem:[#allocation8 + $0x50] sm:$0xff] %vm104, %v2314
    %2693 = vst.msk [vmem:[#allocation8 + $0x58] sm:$0xff] %vm104, %v2387
    %2694 = vst.msk [vmem:[#allocation8 + $0x60] sm:$0xff] %vm104, %v2460
    %2695 = vst.msk [vmem:[#allocation8 + $0x68] sm:$0xff] %vm104, %v2533
    %2696 = vst.msk [vmem:[#allocation8 + $0x70] sm:$0xff] %vm104, %v2606
    %2697 = vst.msk [vmem:[#allocation8 + $0x78] sm:$0xff] %vm104, %v2679
    // Predicated region
    $region26: #{tpu_custom_call.1} parent=1 // pred_check
      _
    $region27: #{tpu_custom_call.1} parent=1 // pred_check_branch
      %2699 = sbr.rel (0) target = $region29
    $region28: #{tpu_custom_call.1} parent=1 // pred_region
      %s2701 = ssub.s32 2048, 2048
      %2702 = vsyncadd [#allocation4], %s2701
      %s2703 = sshll.u32 [#allocation8], 4
      %s2704 = int_to_ptr.vmem [resolvable:$true] %s2703
      %2709 = dma.vmem_to_hbm [thread:$0]  %s2704, 2048, %s3, [#allocation4], 128, 128, 8
    $region29: #{tpu_custom_call.1} parent=1 // pred_fallthru
      _
    // Predicated region
    $region30: #{tpu_custom_call.1} parent=1 // pred_check
      _
    $region31: #{tpu_custom_call.1} parent=1 // pred_check_branch
      %2711 = sbr.rel (0) target = $region33
    $region32: #{tpu_custom_call.1} parent=1 // pred_region
      %2712 = dma.done [#allocation4], 2048
    $region33: #{tpu_custom_call.1} parent=1 // pred_fallthru
      _
    %2713 = vsyncpa [#allocation3], 1
    %2714 = vsyncpa [#allocation6], 1
    %2715 = vsyncpa [#allocation4], 1

</llo_original>
